<compile_context>
chip_gen: v7x
topology: tpu7x:2x2x1
jax: 0.10.0
libtpu: 0.0.40
codegen_flags: <defaults>
</compile_context>

<pallas_src>
import functools

import jax
import jax.numpy as jnp
from jax import lax
from jax.experimental import pallas as pl
from jax.experimental.pallas import tpu as pltpu


def _rel_block_kernel(len_ref, x_ref,
                      wqkv_ref, bqkv_ref,
                      woh_ref, bo_ref,
                      g1_ref, g2_ref,
                      wig_ref, big_ref, wout_ref, bout_ref,
                      o_ref, *, n_heads, batch_block, alpha, eps):
    bt = pl.program_id(0)
    Bb = batch_block
    S = x_ref.shape[1]
    D = x_ref.shape[2]
    H = n_heads
    dh = D // H
    d_ff = wout_ref.shape[0]
    M = Bb * S
    f32, bf16 = jnp.float32, jnp.bfloat16

    # ---- fold the batch tile into the matmul M dimension (layout-free) ------
    xb = x_ref[...].reshape(M, D).astype(bf16)

    # ---- fused QKV projection: (Bb*S, D) @ (D, 3D) --------------------------
    # 1/sqrt(dh), content bias u and bq are pre-folded into wqkv/bqkv columns.
    qkv = jnp.dot(xb, wqkv_ref[...], preferred_element_type=f32) + bqkv_ref[...]
    q3 = qkv[:, :D].reshape(Bb, S, D)
    k3 = qkv[:, D:2 * D].reshape(Bb, S, D)
    v3 = qkv[:, 2 * D:].reshape(Bb, S, D)

    # ---- key-padding mask as an additive bias, built once per grid step -----
    key_iota = lax.broadcasted_iota(jnp.int32, (1, 1, S), 2)
    rows = [jnp.where(key_iota < len_ref[bt * Bb + bb], 0.0, jnp.float32(-1e30))
            for bb in range(Bb)]
    bias = rows[0] if Bb == 1 else jnp.concatenate(rows, axis=0)      # (Bb,1,S)

    # ---- self-attention: batched over the batch tile, MXU-accumulated -------
    # output projection (no (H,S,D) intermediate, no cross-head VPU sum).
    acc = jnp.zeros((M, D), f32)
    for h in range(H):
        lo, hi = h * dh, (h + 1) * dh
        qh = q3[:, :, lo:hi].astype(bf16)
        kh = k3[:, :, lo:hi].astype(bf16)
        vh = v3[:, :, lo:hi].astype(bf16)
        s = jnp.einsum('bqd,bkd->bqk', qh, kh,
                       preferred_element_type=f32)                    # (Bb,S,S)
        s = s + bias
        s = s - jnp.max(s, axis=-1, keepdims=True)
        p = jnp.exp(s)
        p = p * pl.reciprocal(jnp.sum(p, axis=-1, keepdims=True), approx=True)
        ctx = jnp.einsum('bqk,bkd->bqd', p.astype(bf16), vh,
                         preferred_element_type=f32)                  # (Bb,S,dh)
        acc = acc + jnp.dot(ctx.reshape(M, dh).astype(bf16), woh_ref[h],
                            preferred_element_type=f32)
    attn = acc + bo_ref[...]

    # ---- residual 1 + RMSNorm1 (dropout = identity at inference) ------------
    # re-read x_ref here instead of holding a f32 copy live across attention.
    x1 = attn + x_ref[...].reshape(M, D).astype(f32) * alpha
    x1 = x1 * lax.rsqrt(jnp.mean(x1 * x1, axis=-1, keepdims=True) + eps) * g1_ref[...]

    # ---- GLU feed-forward: fused in/gate projection --------------------------
    ag = jnp.dot(x1.astype(bf16), wig_ref[...], preferred_element_type=f32) + big_ref[...]
    a = ag[:, :d_ff]
    g = ag[:, d_ff:]
    hgate = (a * jax.nn.sigmoid(g)).astype(bf16)
    ffn = jnp.dot(hgate, wout_ref[...], preferred_element_type=f32) + bout_ref[...]

    # ---- residual 2 + RMSNorm2 ------------------------------------------------
    x2 = ffn + x1 * alpha
    x2 = x2 * lax.rsqrt(jnp.mean(x2 * x2, axis=-1, keepdims=True) + eps) * g2_ref[...]

    # ---- single lane-dense 3D store -------------------------------------------
    o_ref[...] = x2.reshape(Bb, S, D).astype(o_ref.dtype)


def _target_rows():
    """M-row target for the batch fold: 128 on v5e, 256 on v6e/v7x."""
    try:
        info = pltpu.get_tpu_info()
        name = str(getattr(info, "chip_version", "")).lower()
        if "5" in name:
            return 128
    except Exception:
        pass
    return 256


def _vmem_limit_bytes():
    """Derive a VMEM budget from the chip instead of hard-coding it."""
    try:
        cap = int(pltpu.get_tpu_info().vmem_capacity_bytes)
    except Exception:
        cap = 64 * 1024 * 1024
    return int(min(100 * 1024 * 1024, max(32 * 1024 * 1024, (cap * 3) // 4)))


def _pick_batch_block(B, S, target_rows):
    """Largest Bb with Bb*S <= target_rows, keeping >= 2 grid steps when B >= 2
    (so megacore / 2-TC chips always have work on both cores)."""
    min_tiles = 2 if B >= 2 else 1
    best = 1
    for cand in range(1, B + 1):
        if B % cand == 0 and cand * S <= target_rows and B // cand >= min_tiles:
            best = cand
    return best


def rel_transformer_encoder_block(x, src_len, params, *, n_heads, alpha,
                                  eps=1e-6, batch_block=None):
    B, S, D = x.shape
    assert D % n_heads == 0
    dh = D // n_heads
    d_ff = params["w_in"].shape[1]

    if batch_block is None:
        batch_block = _pick_batch_block(B, S, _target_rows())
    Bb = batch_block
    assert B % Bb == 0, "batch_block must divide the batch size"

    f32, bf16 = jnp.float32, jnp.bfloat16
    scale = 1.0 / (float(dh) ** 0.5)

    # Packed / pre-folded weights (one-time work outside the kernel; in a real
    # model this happens at parameter-load time).
    wq_s = params["wq"].astype(f32) * scale
    bq_s = (params["bq"].astype(f32) + params["u"].astype(f32)) * scale
    w_qkv = jnp.concatenate([wq_s, params["wk"], params["wv"]], axis=1).astype(bf16)
    b_qkv = jnp.concatenate([bq_s, params["bk"], params["bv"]], axis=1).astype(f32)
    w_o_heads = params["wo"].reshape(n_heads, dh, D).astype(bf16)
    w_ig = jnp.concatenate([params["w_in"], params["w_gate"]], axis=1).astype(bf16)
    b_ig = jnp.concatenate([params["b_in"], params["b_gate"]], axis=1).astype(f32)
    w_out = params["w_out"].astype(bf16)

    full = lambda shape: pl.BlockSpec(shape, lambda bt, lens, _n=len(shape): (0,) * _n)

    grid_spec = pltpu.PrefetchScalarGridSpec(
        num_scalar_prefetch=1,                       # src_len -> SMEM
        grid=(B // Bb,),
        in_specs=[
            pl.BlockSpec((Bb, S, D), lambda bt, lens: (bt, 0, 0)),   # x
            full((D, 3 * D)), full((1, 3 * D)),                      # w_qkv, b_qkv
            full((n_heads, dh, D)), full((1, D)),                    # wo (head-major), bo
            full((1, D)), full((1, D)),                              # g1, g2
            full((D, 2 * d_ff)), full((1, 2 * d_ff)),                # w_ig, b_ig
            full((d_ff, D)), full((1, D)),                           # w_out, b_out
        ],
        out_specs=pl.BlockSpec((Bb, S, D), lambda bt, lens: (bt, 0, 0)),
    )

    kernel = functools.partial(_rel_block_kernel, n_heads=n_heads,
                               batch_block=Bb, alpha=float(alpha), eps=float(eps))

    return pl.pallas_call(
        kernel,
        out_shape=jax.ShapeDtypeStruct((B, S, D), x.dtype),
        grid_spec=grid_spec,
        compiler_params=pltpu.CompilerParams(
            dimension_semantics=("parallel",),
            vmem_limit_bytes=_vmem_limit_bytes()),
    )(src_len, x, w_qkv, b_qkv, w_o_heads, params["bo"],
      params["g1"], params["g2"], w_ig, b_ig, w_out, params["b_out"])


def _reference(x, src_len, params, *, n_heads, alpha, eps=1e-6):
    """Pure-JAX (f32) mirror of the module for correctness checking."""
    B, S, D = x.shape
    dh = D // n_heads
    outs = []
    for b in range(B):
        xb = x[b]
        q = xb @ params["wq"] + params["bq"]
        k = xb @ params["wk"] + params["bk"]
        v = xb @ params["wv"] + params["bv"]
        mask = jnp.arange(S)[None, :] < src_len[b]
        heads = []
        for hh in range(n_heads):
            lo, hi = hh * dh, (hh + 1) * dh
            s = (q[:, lo:hi] + params["u"][:, lo:hi]) @ k[:, lo:hi].T / jnp.sqrt(float(dh))
            s = jnp.where(mask, s, -1e30)
            p = jax.nn.softmax(s, axis=-1)
            heads.append(p @ v[:, lo:hi])
        attn = jnp.concatenate(heads, axis=-1) @ params["wo"] + params["bo"]
        x1 = attn + xb * alpha
        x1 = x1 * lax.rsqrt(jnp.mean(x1 * x1, -1, keepdims=True) + eps) * params["g1"]
        a = x1 @ params["w_in"] + params["b_in"]
        g = x1 @ params["w_gate"] + params["b_gate"]
        ffn = (a * jax.nn.sigmoid(g)) @ params["w_out"] + params["b_out"]
        x2 = ffn + x1 * alpha
        x2 = x2 * lax.rsqrt(jnp.mean(x2 * x2, -1, keepdims=True) + eps) * params["g2"]
        outs.append(x2)
    return jnp.stack(outs)


def make_params(key, d_model, d_ff):
    ks = jax.random.split(key, 16)
    n = lambda k, shape, s=0.02: (s * jax.random.normal(k, shape)).astype(jnp.float32)
    return {
        "wq": n(ks[0], (d_model, d_model)), "bq": jnp.zeros((1, d_model), jnp.float32),
        "wk": n(ks[1], (d_model, d_model)), "bk": jnp.zeros((1, d_model), jnp.float32),
        "wv": n(ks[2], (d_model, d_model)), "bv": jnp.zeros((1, d_model), jnp.float32),
        "wo": n(ks[3], (d_model, d_model)), "bo": jnp.zeros((1, d_model), jnp.float32),
        "u":  n(ks[4], (1, d_model)),
        "g1": jnp.ones((1, d_model), jnp.float32),
        "g2": jnp.ones((1, d_model), jnp.float32),
        "w_in":   n(ks[5], (d_model, d_ff)), "b_in":   jnp.zeros((1, d_ff), jnp.float32),
        "w_gate": n(ks[6], (d_model, d_ff)), "b_gate": jnp.zeros((1, d_ff), jnp.float32),
        "w_out":  n(ks[7], (d_ff, d_model)), "b_out":  jnp.zeros((1, d_model), jnp.float32),
    }


if __name__ == "__main__":
    # Small smoke-test shapes (benchmarking should use D multiple of 128,
    # dh >= 64 — these dims only validate correctness, not performance).
    B, S, D, H, D_FF = 2, 8, 32, 4, 64
    ALPHA = 1.0

    key = jax.random.PRNGKey(0)
    kx, kp = jax.random.split(key)
    x = jax.random.normal(kx, (B, S, D), dtype=jnp.float32)
    src_len = jnp.array([S, 5], dtype=jnp.int32)
    params = make_params(kp, D, D_FF)

    out = rel_transformer_encoder_block(x, src_len, params, n_heads=H, alpha=ALPHA)
    out = jax.block_until_ready(out)

    ref = _reference(x, src_len, params, n_heads=H, alpha=ALPHA)
    assert out.shape == (B, S, D)
    err = float(jnp.max(jnp.abs(out - ref)))
    # bf16 MXU operands + approx reciprocal vs. pure-f32 reference.
    assert err < 2e-2, f"mismatch vs. pure-JAX reference: {err}"

    print("KERNEL_OK")
</pallas_src>

<mosaic_0001>
module attributes {stable_mosaic.version = 11 : i64} {
  func.func @_rel_block_kernel(%arg0: i32, %arg1: memref<2xi32, #tpu.memory_space<smem>>, %arg2: memref<1x8x32xf32, #tpu.memory_space<vmem>>, %arg3: memref<32x96xbf16, #tpu.memory_space<vmem>>, %arg4: memref<1x96xf32, #tpu.memory_space<vmem>>, %arg5: memref<4x8x32xbf16, #tpu.memory_space<vmem>>, %arg6: memref<1x32xf32, #tpu.memory_space<vmem>>, %arg7: memref<1x32xf32, #tpu.memory_space<vmem>>, %arg8: memref<1x32xf32, #tpu.memory_space<vmem>>, %arg9: memref<32x128xbf16, #tpu.memory_space<vmem>>, %arg10: memref<1x128xf32, #tpu.memory_space<vmem>>, %arg11: memref<64x32xbf16, #tpu.memory_space<vmem>>, %arg12: memref<1x32xf32, #tpu.memory_space<vmem>>, %arg13: memref<1x8x32xf32, #tpu.memory_space<vmem>>) attributes {dimension_semantics = [#tpu.dimension_semantics<parallel>], iteration_bounds = array<i64: 2>, scalar_prefetch = 1 : i64, scratch_operands = 0 : i64, tpu.core_type = #tpu.core_type<tc>, window_params = [{transform_indices = @transform_0, window_bounds = array<i64: 1, 8, 32>}, {pipeline_mode = #tpu.pipeline_mode<synchronous>, transform_indices = @transform_1, window_bounds = array<i64: 32, 96>}, {pipeline_mode = #tpu.pipeline_mode<synchronous>, transform_indices = @transform_2, window_bounds = array<i64: 1, 96>}, {pipeline_mode = #tpu.pipeline_mode<synchronous>, transform_indices = @transform_3, window_bounds = array<i64: 4, 8, 32>}, {pipeline_mode = #tpu.pipeline_mode<synchronous>, transform_indices = @transform_4, window_bounds = array<i64: 1, 32>}, {pipeline_mode = #tpu.pipeline_mode<synchronous>, transform_indices = @transform_5, window_bounds = array<i64: 1, 32>}, {pipeline_mode = #tpu.pipeline_mode<synchronous>, transform_indices = @transform_6, window_bounds = array<i64: 1, 32>}, {pipeline_mode = #tpu.pipeline_mode<synchronous>, transform_indices = @transform_7, window_bounds = array<i64: 32, 128>}, {pipeline_mode = #tpu.pipeline_mode<synchronous>, transform_indices = @transform_8, window_bounds = array<i64: 1, 128>}, {pipeline_mode = #tpu.pipeline_mode<synchronous>, transform_indices = @transform_9, window_bounds = array<i64: 64, 32>}, {pipeline_mode = #tpu.pipeline_mode<synchronous>, transform_indices = @transform_10, window_bounds = array<i64: 1, 32>}, {transform_indices = @transform_11, window_bounds = array<i64: 1, 8, 32>}]} {
    %c0 = arith.constant 0 : index
    %c0_0 = arith.constant 0 : index
    %c0_1 = arith.constant 0 : index
    %0 = vector.load %arg2[%c0, %c0_0, %c0_1] : memref<1x8x32xf32, #tpu.memory_space<vmem>>, vector<1x8x32xf32>
    %1 = vector.shape_cast %0 : vector<1x8x32xf32> to vector<8x32xf32>
    %2 = arith.truncf %1 : vector<8x32xf32> to vector<8x32xbf16>
    %c0_2 = arith.constant 0 : index
    %c0_3 = arith.constant 0 : index
    %3 = vector.load %arg3[%c0_2, %c0_3] : memref<32x96xbf16, #tpu.memory_space<vmem>>, vector<32x96xbf16>
    %cst = arith.constant dense<0.000000e+00> : vector<8x96xf32>
    %4 = tpu.matmul %2, %3, %cst {dimension_numbers = #tpu.dot_dimension_numbers<[1], [0], [0], [1], [0, 0, 1, 1], [], []>} : vector<8x32xbf16>, vector<32x96xbf16>, vector<8x96xf32> -> vector<8x96xf32>
    %c0_4 = arith.constant 0 : index
    %c0_5 = arith.constant 0 : index
    %5 = vector.load %arg4[%c0_4, %c0_5] : memref<1x96xf32, #tpu.memory_space<vmem>>, vector<1x96xf32>
    %6 = vector.broadcast %5 : vector<1x96xf32> to vector<8x96xf32>
    %7 = arith.addf %4, %6 : vector<8x96xf32>
    %8 = vector.extract_strided_slice %7 {offsets = [0, 0], sizes = [8, 32], strides = [1, 1]} : vector<8x96xf32> to vector<8x32xf32>
    %9 = vector.shape_cast %8 : vector<8x32xf32> to vector<1x8x32xf32>
    %10 = vector.extract_strided_slice %7 {offsets = [0, 32], sizes = [8, 32], strides = [1, 1]} : vector<8x96xf32> to vector<8x32xf32>
    %11 = vector.shape_cast %10 : vector<8x32xf32> to vector<1x8x32xf32>
    %12 = vector.extract_strided_slice %7 {offsets = [0, 64], sizes = [8, 32], strides = [1, 1]} : vector<8x96xf32> to vector<8x32xf32>
    %13 = vector.shape_cast %12 : vector<8x32xf32> to vector<1x8x32xf32>
    %14 = tpu.iota {dimensions = array<i32: 2>} : vector<1x1x8xi32>
    %c1_i32 = arith.constant 1 : i32
    %15 = arith.muli %arg0, %c1_i32 : i32
    %c0_i32 = arith.constant 0 : i32
    %16 = arith.addi %15, %c0_i32 : i32
    %17 = arith.index_cast %16 : i32 to index
    %18 = memref.load %arg1[%17] : memref<2xi32, #tpu.memory_space<smem>>
    %19 = vector.broadcast %18 : i32 to vector<1x1x8xi32>
    %20 = arith.cmpi slt, %14, %19 : vector<1x1x8xi32>
    %cst_6 = arith.constant 0.000000e+00 : f32
    %cst_7 = arith.constant -1.000000e+30 : f32
    %21 = vector.broadcast %cst_6 : f32 to vector<1x1x8xf32>
    %22 = vector.broadcast %cst_7 : f32 to vector<1x1x8xf32>
    %23 = arith.select %20, %21, %22 : vector<1x1x8xi1>, vector<1x1x8xf32>
    %cst_8 = arith.constant 0.000000e+00 : f32
    %24 = vector.broadcast %cst_8 : f32 to vector<8x32xf32>
    %25 = vector.extract_strided_slice %9 {offsets = [0, 0, 0], sizes = [1, 8, 8], strides = [1, 1, 1]} : vector<1x8x32xf32> to vector<1x8x8xf32>
    %26 = arith.truncf %25 : vector<1x8x8xf32> to vector<1x8x8xbf16>
    %27 = vector.extract_strided_slice %11 {offsets = [0, 0, 0], sizes = [1, 8, 8], strides = [1, 1, 1]} : vector<1x8x32xf32> to vector<1x8x8xf32>
    %28 = arith.truncf %27 : vector<1x8x8xf32> to vector<1x8x8xbf16>
    %29 = vector.extract_strided_slice %13 {offsets = [0, 0, 0], sizes = [1, 8, 8], strides = [1, 1, 1]} : vector<1x8x32xf32> to vector<1x8x8xf32>
    %30 = arith.truncf %29 : vector<1x8x8xf32> to vector<1x8x8xbf16>
    "tpu.trace_start"() <{level = 10 : i32, message = "bqd,bkd->bqk"}> : () -> ()
    %cst_9 = arith.constant dense<0.000000e+00> : vector<1x8x8xf32>
    %31 = tpu.matmul %26, %28, %cst_9 {dimension_numbers = #tpu.dot_dimension_numbers<[2], [2], [1], [1], [0, 0, 0, 1, 1, 1], [0], [0]>} : vector<1x8x8xbf16>, vector<1x8x8xbf16>, vector<1x8x8xf32> -> vector<1x8x8xf32>
    "tpu.trace_stop"() : () -> ()
    %32 = vector.broadcast %23 : vector<1x1x8xf32> to vector<1x8x8xf32>
    %33 = arith.addf %31, %32 : vector<1x8x8xf32>
    %cst_10 = arith.constant dense<0xFF800000> : vector<1x8xf32>
    %34 = vector.multi_reduction <maximumf>, %33, %cst_10 [2] : vector<1x8x8xf32> to vector<1x8xf32>
    %35 = vector.shape_cast %34 : vector<1x8xf32> to vector<1x8x1xf32>
    %36 = vector.broadcast %35 : vector<1x8x1xf32> to vector<1x8x8xf32>
    %37 = arith.subf %33, %36 : vector<1x8x8xf32>
    %38 = math.exp %37 : vector<1x8x8xf32>
    %cst_11 = arith.constant dense<0.000000e+00> : vector<1x8xf32>
    %39 = vector.multi_reduction <add>, %38, %cst_11 [2] : vector<1x8x8xf32> to vector<1x8xf32>
    %40 = vector.shape_cast %39 : vector<1x8xf32> to vector<1x8x1xf32>
    %41 = tpu.reciprocal %40 {approx = true} : vector<1x8x1xf32> -> vector<1x8x1xf32>
    %42 = vector.broadcast %41 : vector<1x8x1xf32> to vector<1x8x8xf32>
    %43 = arith.mulf %38, %42 : vector<1x8x8xf32>
    %44 = arith.truncf %43 : vector<1x8x8xf32> to vector<1x8x8xbf16>
    "tpu.trace_start"() <{level = 10 : i32, message = "bqk,bkd->bqd"}> : () -> ()
    %cst_12 = arith.constant dense<0.000000e+00> : vector<1x8x8xf32>
    %45 = tpu.matmul %44, %30, %cst_12 {dimension_numbers = #tpu.dot_dimension_numbers<[2], [1], [1], [2], [0, 0, 0, 1, 1, 2], [0], [0]>} : vector<1x8x8xbf16>, vector<1x8x8xbf16>, vector<1x8x8xf32> -> vector<1x8x8xf32>
    "tpu.trace_stop"() : () -> ()
    %46 = vector.shape_cast %45 : vector<1x8x8xf32> to vector<8x8xf32>
    %47 = arith.truncf %46 : vector<8x8xf32> to vector<8x8xbf16>
    %c0_13 = arith.constant 0 : index
    %c0_14 = arith.constant 0 : index
    %c0_15 = arith.constant 0 : index
    %48 = vector.load %arg5[%c0_13, %c0_14, %c0_15] : memref<4x8x32xbf16, #tpu.memory_space<vmem>>, vector<1x8x32xbf16>
    %49 = vector.shape_cast %48 : vector<1x8x32xbf16> to vector<8x32xbf16>
    %cst_16 = arith.constant dense<0.000000e+00> : vector<8x32xf32>
    %50 = tpu.matmul %47, %49, %cst_16 {dimension_numbers = #tpu.dot_dimension_numbers<[1], [0], [0], [1], [0, 0, 1, 1], [], []>} : vector<8x8xbf16>, vector<8x32xbf16>, vector<8x32xf32> -> vector<8x32xf32>
    %51 = arith.addf %24, %50 : vector<8x32xf32>
    %52 = vector.extract_strided_slice %9 {offsets = [0, 0, 8], sizes = [1, 8, 8], strides = [1, 1, 1]} : vector<1x8x32xf32> to vector<1x8x8xf32>
    %53 = arith.truncf %52 : vector<1x8x8xf32> to vector<1x8x8xbf16>
    %54 = vector.extract_strided_slice %11 {offsets = [0, 0, 8], sizes = [1, 8, 8], strides = [1, 1, 1]} : vector<1x8x32xf32> to vector<1x8x8xf32>
    %55 = arith.truncf %54 : vector<1x8x8xf32> to vector<1x8x8xbf16>
    %56 = vector.extract_strided_slice %13 {offsets = [0, 0, 8], sizes = [1, 8, 8], strides = [1, 1, 1]} : vector<1x8x32xf32> to vector<1x8x8xf32>
    %57 = arith.truncf %56 : vector<1x8x8xf32> to vector<1x8x8xbf16>
    "tpu.trace_start"() <{level = 10 : i32, message = "bqd,bkd->bqk"}> : () -> ()
    %cst_17 = arith.constant dense<0.000000e+00> : vector<1x8x8xf32>
    %58 = tpu.matmul %53, %55, %cst_17 {dimension_numbers = #tpu.dot_dimension_numbers<[2], [2], [1], [1], [0, 0, 0, 1, 1, 1], [0], [0]>} : vector<1x8x8xbf16>, vector<1x8x8xbf16>, vector<1x8x8xf32> -> vector<1x8x8xf32>
    "tpu.trace_stop"() : () -> ()
    %59 = vector.broadcast %23 : vector<1x1x8xf32> to vector<1x8x8xf32>
    %60 = arith.addf %58, %59 : vector<1x8x8xf32>
    %cst_18 = arith.constant dense<0xFF800000> : vector<1x8xf32>
    %61 = vector.multi_reduction <maximumf>, %60, %cst_18 [2] : vector<1x8x8xf32> to vector<1x8xf32>
    %62 = vector.shape_cast %61 : vector<1x8xf32> to vector<1x8x1xf32>
    %63 = vector.broadcast %62 : vector<1x8x1xf32> to vector<1x8x8xf32>
    %64 = arith.subf %60, %63 : vector<1x8x8xf32>
    %65 = math.exp %64 : vector<1x8x8xf32>
    %cst_19 = arith.constant dense<0.000000e+00> : vector<1x8xf32>
    %66 = vector.multi_reduction <add>, %65, %cst_19 [2] : vector<1x8x8xf32> to vector<1x8xf32>
    %67 = vector.shape_cast %66 : vector<1x8xf32> to vector<1x8x1xf32>
    %68 = tpu.reciprocal %67 {approx = true} : vector<1x8x1xf32> -> vector<1x8x1xf32>
    %69 = vector.broadcast %68 : vector<1x8x1xf32> to vector<1x8x8xf32>
    %70 = arith.mulf %65, %69 : vector<1x8x8xf32>
    %71 = arith.truncf %70 : vector<1x8x8xf32> to vector<1x8x8xbf16>
    "tpu.trace_start"() <{level = 10 : i32, message = "bqk,bkd->bqd"}> : () -> ()
    %cst_20 = arith.constant dense<0.000000e+00> : vector<1x8x8xf32>
    %72 = tpu.matmul %71, %57, %cst_20 {dimension_numbers = #tpu.dot_dimension_numbers<[2], [1], [1], [2], [0, 0, 0, 1, 1, 2], [0], [0]>} : vector<1x8x8xbf16>, vector<1x8x8xbf16>, vector<1x8x8xf32> -> vector<1x8x8xf32>
    "tpu.trace_stop"() : () -> ()
    %73 = vector.shape_cast %72 : vector<1x8x8xf32> to vector<8x8xf32>
    %74 = arith.truncf %73 : vector<8x8xf32> to vector<8x8xbf16>
    %c1 = arith.constant 1 : index
    %c0_21 = arith.constant 0 : index
    %c0_22 = arith.constant 0 : index
    %75 = vector.load %arg5[%c1, %c0_21, %c0_22] : memref<4x8x32xbf16, #tpu.memory_space<vmem>>, vector<1x8x32xbf16>
    %76 = vector.shape_cast %75 : vector<1x8x32xbf16> to vector<8x32xbf16>
    %cst_23 = arith.constant dense<0.000000e+00> : vector<8x32xf32>
    %77 = tpu.matmul %74, %76, %cst_23 {dimension_numbers = #tpu.dot_dimension_numbers<[1], [0], [0], [1], [0, 0, 1, 1], [], []>} : vector<8x8xbf16>, vector<8x32xbf16>, vector<8x32xf32> -> vector<8x32xf32>
    %78 = arith.addf %51, %77 : vector<8x32xf32>
    %79 = vector.extract_strided_slice %9 {offsets = [0, 0, 16], sizes = [1, 8, 8], strides = [1, 1, 1]} : vector<1x8x32xf32> to vector<1x8x8xf32>
    %80 = arith.truncf %79 : vector<1x8x8xf32> to vector<1x8x8xbf16>
    %81 = vector.extract_strided_slice %11 {offsets = [0, 0, 16], sizes = [1, 8, 8], strides = [1, 1, 1]} : vector<1x8x32xf32> to vector<1x8x8xf32>
    %82 = arith.truncf %81 : vector<1x8x8xf32> to vector<1x8x8xbf16>
    %83 = vector.extract_strided_slice %13 {offsets = [0, 0, 16], sizes = [1, 8, 8], strides = [1, 1, 1]} : vector<1x8x32xf32> to vector<1x8x8xf32>
    %84 = arith.truncf %83 : vector<1x8x8xf32> to vector<1x8x8xbf16>
    "tpu.trace_start"() <{level = 10 : i32, message = "bqd,bkd->bqk"}> : () -> ()
    %cst_24 = arith.constant dense<0.000000e+00> : vector<1x8x8xf32>
    %85 = tpu.matmul %80, %82, %cst_24 {dimension_numbers = #tpu.dot_dimension_numbers<[2], [2], [1], [1], [0, 0, 0, 1, 1, 1], [0], [0]>} : vector<1x8x8xbf16>, vector<1x8x8xbf16>, vector<1x8x8xf32> -> vector<1x8x8xf32>
    "tpu.trace_stop"() : () -> ()
    %86 = vector.broadcast %23 : vector<1x1x8xf32> to vector<1x8x8xf32>
    %87 = arith.addf %85, %86 : vector<1x8x8xf32>
    %cst_25 = arith.constant dense<0xFF800000> : vector<1x8xf32>
    %88 = vector.multi_reduction <maximumf>, %87, %cst_25 [2] : vector<1x8x8xf32> to vector<1x8xf32>
    %89 = vector.shape_cast %88 : vector<1x8xf32> to vector<1x8x1xf32>
    %90 = vector.broadcast %89 : vector<1x8x1xf32> to vector<1x8x8xf32>
    %91 = arith.subf %87, %90 : vector<1x8x8xf32>
    %92 = math.exp %91 : vector<1x8x8xf32>
    %cst_26 = arith.constant dense<0.000000e+00> : vector<1x8xf32>
    %93 = vector.multi_reduction <add>, %92, %cst_26 [2] : vector<1x8x8xf32> to vector<1x8xf32>
    %94 = vector.shape_cast %93 : vector<1x8xf32> to vector<1x8x1xf32>
    %95 = tpu.reciprocal %94 {approx = true} : vector<1x8x1xf32> -> vector<1x8x1xf32>
    %96 = vector.broadcast %95 : vector<1x8x1xf32> to vector<1x8x8xf32>
    %97 = arith.mulf %92, %96 : vector<1x8x8xf32>
    %98 = arith.truncf %97 : vector<1x8x8xf32> to vector<1x8x8xbf16>
    "tpu.trace_start"() <{level = 10 : i32, message = "bqk,bkd->bqd"}> : () -> ()
    %cst_27 = arith.constant dense<0.000000e+00> : vector<1x8x8xf32>
    %99 = tpu.matmul %98, %84, %cst_27 {dimension_numbers = #tpu.dot_dimension_numbers<[2], [1], [1], [2], [0, 0, 0, 1, 1, 2], [0], [0]>} : vector<1x8x8xbf16>, vector<1x8x8xbf16>, vector<1x8x8xf32> -> vector<1x8x8xf32>
    "tpu.trace_stop"() : () -> ()
    %100 = vector.shape_cast %99 : vector<1x8x8xf32> to vector<8x8xf32>
    %101 = arith.truncf %100 : vector<8x8xf32> to vector<8x8xbf16>
    %c2 = arith.constant 2 : index
    %c0_28 = arith.constant 0 : index
    %c0_29 = arith.constant 0 : index
    %102 = vector.load %arg5[%c2, %c0_28, %c0_29] : memref<4x8x32xbf16, #tpu.memory_space<vmem>>, vector<1x8x32xbf16>
    %103 = vector.shape_cast %102 : vector<1x8x32xbf16> to vector<8x32xbf16>
    %cst_30 = arith.constant dense<0.000000e+00> : vector<8x32xf32>
    %104 = tpu.matmul %101, %103, %cst_30 {dimension_numbers = #tpu.dot_dimension_numbers<[1], [0], [0], [1], [0, 0, 1, 1], [], []>} : vector<8x8xbf16>, vector<8x32xbf16>, vector<8x32xf32> -> vector<8x32xf32>
    %105 = arith.addf %78, %104 : vector<8x32xf32>
    %106 = vector.extract_strided_slice %9 {offsets = [0, 0, 24], sizes = [1, 8, 8], strides = [1, 1, 1]} : vector<1x8x32xf32> to vector<1x8x8xf32>
    %107 = arith.truncf %106 : vector<1x8x8xf32> to vector<1x8x8xbf16>
    %108 = vector.extract_strided_slice %11 {offsets = [0, 0, 24], sizes = [1, 8, 8], strides = [1, 1, 1]} : vector<1x8x32xf32> to vector<1x8x8xf32>
    %109 = arith.truncf %108 : vector<1x8x8xf32> to vector<1x8x8xbf16>
    %110 = vector.extract_strided_slice %13 {offsets = [0, 0, 24], sizes = [1, 8, 8], strides = [1, 1, 1]} : vector<1x8x32xf32> to vector<1x8x8xf32>
    %111 = arith.truncf %110 : vector<1x8x8xf32> to vector<1x8x8xbf16>
    "tpu.trace_start"() <{level = 10 : i32, message = "bqd,bkd->bqk"}> : () -> ()
    %cst_31 = arith.constant dense<0.000000e+00> : vector<1x8x8xf32>
    %112 = tpu.matmul %107, %109, %cst_31 {dimension_numbers = #tpu.dot_dimension_numbers<[2], [2], [1], [1], [0, 0, 0, 1, 1, 1], [0], [0]>} : vector<1x8x8xbf16>, vector<1x8x8xbf16>, vector<1x8x8xf32> -> vector<1x8x8xf32>
    "tpu.trace_stop"() : () -> ()
    %113 = vector.broadcast %23 : vector<1x1x8xf32> to vector<1x8x8xf32>
    %114 = arith.addf %112, %113 : vector<1x8x8xf32>
    %cst_32 = arith.constant dense<0xFF800000> : vector<1x8xf32>
    %115 = vector.multi_reduction <maximumf>, %114, %cst_32 [2] : vector<1x8x8xf32> to vector<1x8xf32>
    %116 = vector.shape_cast %115 : vector<1x8xf32> to vector<1x8x1xf32>
    %117 = vector.broadcast %116 : vector<1x8x1xf32> to vector<1x8x8xf32>
    %118 = arith.subf %114, %117 : vector<1x8x8xf32>
    %119 = math.exp %118 : vector<1x8x8xf32>
    %cst_33 = arith.constant dense<0.000000e+00> : vector<1x8xf32>
    %120 = vector.multi_reduction <add>, %119, %cst_33 [2] : vector<1x8x8xf32> to vector<1x8xf32>
    %121 = vector.shape_cast %120 : vector<1x8xf32> to vector<1x8x1xf32>
    %122 = tpu.reciprocal %121 {approx = true} : vector<1x8x1xf32> -> vector<1x8x1xf32>
    %123 = vector.broadcast %122 : vector<1x8x1xf32> to vector<1x8x8xf32>
    %124 = arith.mulf %119, %123 : vector<1x8x8xf32>
    %125 = arith.truncf %124 : vector<1x8x8xf32> to vector<1x8x8xbf16>
    "tpu.trace_start"() <{level = 10 : i32, message = "bqk,bkd->bqd"}> : () -> ()
    %cst_34 = arith.constant dense<0.000000e+00> : vector<1x8x8xf32>
    %126 = tpu.matmul %125, %111, %cst_34 {dimension_numbers = #tpu.dot_dimension_numbers<[2], [1], [1], [2], [0, 0, 0, 1, 1, 2], [0], [0]>} : vector<1x8x8xbf16>, vector<1x8x8xbf16>, vector<1x8x8xf32> -> vector<1x8x8xf32>
    "tpu.trace_stop"() : () -> ()
    %127 = vector.shape_cast %126 : vector<1x8x8xf32> to vector<8x8xf32>
    %128 = arith.truncf %127 : vector<8x8xf32> to vector<8x8xbf16>
    %c3 = arith.constant 3 : index
    %c0_35 = arith.constant 0 : index
    %c0_36 = arith.constant 0 : index
    %129 = vector.load %arg5[%c3, %c0_35, %c0_36] : memref<4x8x32xbf16, #tpu.memory_space<vmem>>, vector<1x8x32xbf16>
    %130 = vector.shape_cast %129 : vector<1x8x32xbf16> to vector<8x32xbf16>
    %cst_37 = arith.constant dense<0.000000e+00> : vector<8x32xf32>
    %131 = tpu.matmul %128, %130, %cst_37 {dimension_numbers = #tpu.dot_dimension_numbers<[1], [0], [0], [1], [0, 0, 1, 1], [], []>} : vector<8x8xbf16>, vector<8x32xbf16>, vector<8x32xf32> -> vector<8x32xf32>
    %132 = arith.addf %105, %131 : vector<8x32xf32>
    %c0_38 = arith.constant 0 : index
    %c0_39 = arith.constant 0 : index
    %133 = vector.load %arg6[%c0_38, %c0_39] : memref<1x32xf32, #tpu.memory_space<vmem>>, vector<1x32xf32>
    %134 = vector.broadcast %133 : vector<1x32xf32> to vector<8x32xf32>
    %135 = arith.addf %132, %134 : vector<8x32xf32>
    %c0_40 = arith.constant 0 : index
    %c0_41 = arith.constant 0 : index
    %c0_42 = arith.constant 0 : index
    %136 = vector.load %arg2[%c0_40, %c0_41, %c0_42] : memref<1x8x32xf32, #tpu.memory_space<vmem>>, vector<1x8x32xf32>
    %137 = vector.shape_cast %136 : vector<1x8x32xf32> to vector<8x32xf32>
    %cst_43 = arith.constant 1.000000e+00 : f32
    %138 = vector.broadcast %cst_43 : f32 to vector<8x32xf32>
    %139 = arith.mulf %137, %138 : vector<8x32xf32>
    %140 = arith.addf %135, %139 : vector<8x32xf32>
    %141 = arith.mulf %140, %140 : vector<8x32xf32>
    %cst_44 = arith.constant dense<0.000000e+00> : vector<8xf32>
    %142 = vector.multi_reduction <add>, %141, %cst_44 [1] : vector<8x32xf32> to vector<8xf32>
    %143 = vector.shape_cast %142 : vector<8xf32> to vector<8x1xf32>
    %cst_45 = arith.constant 3.200000e+01 : f32
    %144 = vector.broadcast %cst_45 : f32 to vector<8x1xf32>
    %145 = arith.divf %143, %144 : vector<8x1xf32>
    %cst_46 = arith.constant 9.99999997E-7 : f32
    %146 = vector.broadcast %cst_46 : f32 to vector<8x1xf32>
    %147 = arith.addf %145, %146 : vector<8x1xf32>
    %148 = math.rsqrt %147 : vector<8x1xf32>
    %149 = vector.broadcast %148 : vector<8x1xf32> to vector<8x32xf32>
    %150 = arith.mulf %140, %149 : vector<8x32xf32>
    %c0_47 = arith.constant 0 : index
    %c0_48 = arith.constant 0 : index
    %151 = vector.load %arg7[%c0_47, %c0_48] : memref<1x32xf32, #tpu.memory_space<vmem>>, vector<1x32xf32>
    %152 = vector.broadcast %151 : vector<1x32xf32> to vector<8x32xf32>
    %153 = arith.mulf %150, %152 : vector<8x32xf32>
    %154 = arith.truncf %153 : vector<8x32xf32> to vector<8x32xbf16>
    %c0_49 = arith.constant 0 : index
    %c0_50 = arith.constant 0 : index
    %155 = vector.load %arg9[%c0_49, %c0_50] : memref<32x128xbf16, #tpu.memory_space<vmem>>, vector<32x128xbf16>
    %cst_51 = arith.constant dense<0.000000e+00> : vector<8x128xf32>
    %156 = tpu.matmul %154, %155, %cst_51 {dimension_numbers = #tpu.dot_dimension_numbers<[1], [0], [0], [1], [0, 0, 1, 1], [], []>} : vector<8x32xbf16>, vector<32x128xbf16>, vector<8x128xf32> -> vector<8x128xf32>
    %c0_52 = arith.constant 0 : index
    %c0_53 = arith.constant 0 : index
    %157 = vector.load %arg10[%c0_52, %c0_53] : memref<1x128xf32, #tpu.memory_space<vmem>>, vector<1x128xf32>
    %158 = vector.broadcast %157 : vector<1x128xf32> to vector<8x128xf32>
    %159 = arith.addf %156, %158 : vector<8x128xf32>
    %160 = vector.extract_strided_slice %159 {offsets = [0, 0], sizes = [8, 64], strides = [1, 1]} : vector<8x128xf32> to vector<8x64xf32>
    %161 = vector.extract_strided_slice %159 {offsets = [0, 64], sizes = [8, 64], strides = [1, 1]} : vector<8x128xf32> to vector<8x64xf32>
    %162 = arith.negf %161 : vector<8x64xf32>
    %163 = math.exp %162 : vector<8x64xf32>
    %cst_54 = arith.constant 1.000000e+00 : f32
    %164 = vector.broadcast %cst_54 : f32 to vector<8x64xf32>
    %165 = arith.addf %164, %163 : vector<8x64xf32>
    %166 = arith.divf %164, %165 : vector<8x64xf32>
    %167 = arith.mulf %160, %166 : vector<8x64xf32>
    %168 = arith.truncf %167 : vector<8x64xf32> to vector<8x64xbf16>
    %c0_55 = arith.constant 0 : index
    %c0_56 = arith.constant 0 : index
    %169 = vector.load %arg11[%c0_55, %c0_56] : memref<64x32xbf16, #tpu.memory_space<vmem>>, vector<64x32xbf16>
    %cst_57 = arith.constant dense<0.000000e+00> : vector<8x32xf32>
    %170 = tpu.matmul %168, %169, %cst_57 {dimension_numbers = #tpu.dot_dimension_numbers<[1], [0], [0], [1], [0, 0, 1, 1], [], []>} : vector<8x64xbf16>, vector<64x32xbf16>, vector<8x32xf32> -> vector<8x32xf32>
    %c0_58 = arith.constant 0 : index
    %c0_59 = arith.constant 0 : index
    %171 = vector.load %arg12[%c0_58, %c0_59] : memref<1x32xf32, #tpu.memory_space<vmem>>, vector<1x32xf32>
    %172 = vector.broadcast %171 : vector<1x32xf32> to vector<8x32xf32>
    %173 = arith.addf %170, %172 : vector<8x32xf32>
    %cst_60 = arith.constant 1.000000e+00 : f32
    %174 = vector.broadcast %cst_60 : f32 to vector<8x32xf32>
    %175 = arith.mulf %153, %174 : vector<8x32xf32>
    %176 = arith.addf %173, %175 : vector<8x32xf32>
    %177 = arith.mulf %176, %176 : vector<8x32xf32>
    %cst_61 = arith.constant dense<0.000000e+00> : vector<8xf32>
    %178 = vector.multi_reduction <add>, %177, %cst_61 [1] : vector<8x32xf32> to vector<8xf32>
    %179 = vector.shape_cast %178 : vector<8xf32> to vector<8x1xf32>
    %cst_62 = arith.constant 3.200000e+01 : f32
    %180 = vector.broadcast %cst_62 : f32 to vector<8x1xf32>
    %181 = arith.divf %179, %180 : vector<8x1xf32>
    %cst_63 = arith.constant 9.99999997E-7 : f32
    %182 = vector.broadcast %cst_63 : f32 to vector<8x1xf32>
    %183 = arith.addf %181, %182 : vector<8x1xf32>
    %184 = math.rsqrt %183 : vector<8x1xf32>
    %185 = vector.broadcast %184 : vector<8x1xf32> to vector<8x32xf32>
    %186 = arith.mulf %176, %185 : vector<8x32xf32>
    %c0_64 = arith.constant 0 : index
    %c0_65 = arith.constant 0 : index
    %187 = vector.load %arg8[%c0_64, %c0_65] : memref<1x32xf32, #tpu.memory_space<vmem>>, vector<1x32xf32>
    %188 = vector.broadcast %187 : vector<1x32xf32> to vector<8x32xf32>
    %189 = arith.mulf %186, %188 : vector<8x32xf32>
    %190 = vector.shape_cast %189 : vector<8x32xf32> to vector<1x8x32xf32>
    %c0_66 = arith.constant 0 : index
    %c0_67 = arith.constant 0 : index
    %c0_68 = arith.constant 0 : index
    %191 = vector.load %arg13[%c0_66, %c0_67, %c0_68] : memref<1x8x32xf32, #tpu.memory_space<vmem>>, vector<1x8x32xf32>
    tpu.vector_store %arg13[%c0_66, %c0_67, %c0_68], %190 {strides = array<i32>} : memref<1x8x32xf32, #tpu.memory_space<vmem>>, vector<1x8x32xf32>,
    return
  }
  func.func @transform_0(%arg0: i32, %arg1: memref<2xi32, #tpu.memory_space<smem>>) -> (i32, i32, i32) {
    %c0_i32 = arith.constant 0 : i32
    %c0_i32_0 = arith.constant 0 : i32
    %c0_i32_1 = arith.constant 0 : i32
    return %arg0, %c0_i32, %c0_i32_0 : i32, i32, i32
  }
  func.func @transform_1(%arg0: i32, %arg1: memref<2xi32, #tpu.memory_space<smem>>) -> (i32, i32) {
    %c0_i32 = arith.constant 0 : i32
    %c0_i32_0 = arith.constant 0 : i32
    %c0_i32_1 = arith.constant 0 : i32
    return %c0_i32, %c0_i32_0 : i32, i32
  }
  func.func @transform_2(%arg0: i32, %arg1: memref<2xi32, #tpu.memory_space<smem>>) -> (i32, i32) {
    %c0_i32 = arith.constant 0 : i32
    %c0_i32_0 = arith.constant 0 : i32
    %c0_i32_1 = arith.constant 0 : i32
    return %c0_i32, %c0_i32_0 : i32, i32
  }
  func.func @transform_3(%arg0: i32, %arg1: memref<2xi32, #tpu.memory_space<smem>>) -> (i32, i32, i32) {
    %c0_i32 = arith.constant 0 : i32
    %c0_i32_0 = arith.constant 0 : i32
    %c0_i32_1 = arith.constant 0 : i32
    %c0_i32_2 = arith.constant 0 : i32
    return %c0_i32, %c0_i32_0, %c0_i32_1 : i32, i32, i32
  }
  func.func @transform_4(%arg0: i32, %arg1: memref<2xi32, #tpu.memory_space<smem>>) -> (i32, i32) {
    %c0_i32 = arith.constant 0 : i32
    %c0_i32_0 = arith.constant 0 : i32
    %c0_i32_1 = arith.constant 0 : i32
    return %c0_i32, %c0_i32_0 : i32, i32
  }
  func.func @transform_5(%arg0: i32, %arg1: memref<2xi32, #tpu.memory_space<smem>>) -> (i32, i32) {
    %c0_i32 = arith.constant 0 : i32
    %c0_i32_0 = arith.constant 0 : i32
    %c0_i32_1 = arith.constant 0 : i32
    return %c0_i32, %c0_i32_0 : i32, i32
  }
  func.func @transform_6(%arg0: i32, %arg1: memref<2xi32, #tpu.memory_space<smem>>) -> (i32, i32) {
    %c0_i32 = arith.constant 0 : i32
    %c0_i32_0 = arith.constant 0 : i32
    %c0_i32_1 = arith.constant 0 : i32
    return %c0_i32, %c0_i32_0 : i32, i32
  }
  func.func @transform_7(%arg0: i32, %arg1: memref<2xi32, #tpu.memory_space<smem>>) -> (i32, i32) {
    %c0_i32 = arith.constant 0 : i32
    %c0_i32_0 = arith.constant 0 : i32
    %c0_i32_1 = arith.constant 0 : i32
    return %c0_i32, %c0_i32_0 : i32, i32
  }
  func.func @transform_8(%arg0: i32, %arg1: memref<2xi32, #tpu.memory_space<smem>>) -> (i32, i32) {
    %c0_i32 = arith.constant 0 : i32
    %c0_i32_0 = arith.constant 0 : i32
    %c0_i32_1 = arith.constant 0 : i32
    return %c0_i32, %c0_i32_0 : i32, i32
  }
  func.func @transform_9(%arg0: i32, %arg1: memref<2xi32, #tpu.memory_space<smem>>) -> (i32, i32) {
    %c0_i32 = arith.constant 0 : i32
    %c0_i32_0 = arith.constant 0 : i32
    %c0_i32_1 = arith.constant 0 : i32
    return %c0_i32, %c0_i32_0 : i32, i32
  }
  func.func @transform_10(%arg0: i32, %arg1: memref<2xi32, #tpu.memory_space<smem>>) -> (i32, i32) {
    %c0_i32 = arith.constant 0 : i32
    %c0_i32_0 = arith.constant 0 : i32
    %c0_i32_1 = arith.constant 0 : i32
    return %c0_i32, %c0_i32_0 : i32, i32
  }
  func.func @transform_11(%arg0: i32, %arg1: memref<2xi32, #tpu.memory_space<smem>>) -> (i32, i32, i32) {
    %c0_i32 = arith.constant 0 : i32
    %c0_i32_0 = arith.constant 0 : i32
    %c0_i32_1 = arith.constant 0 : i32
    return %arg0, %c0_i32, %c0_i32_0 : i32, i32, i32
  }
}

</mosaic_0001>

<llo_original>
// kernel: tpu_custom_call.1
$region0: #{tpu_custom_call.1}
  #allocation0 [shape = 'u32[]', space=smem, size = 0x4, offset = 0x4, fixed_abs, tag = 'smem constant byte address 0x4 - core index']
  #allocation1 [shape = 'u32[144,128]{1,0:T(1,128)}', space=vmem, size = 0x12000, scoped, tag = 'internal scratch']
  #allocation2 [shape = 's32[1]{0}', space=sflag, size = 0x4, scoped, tag = 'scoped memory for tpu_custom_call.1']
  #allocation3 [shape = 'u8[512]{0}', space=smem, size = 0x200, scoped, tag = 'prefetched SMEM operand 0']
  %s0 = inlined_call_operand.hbm [shape: s32[2], index: 0, kind: input, shape index: {}]
  %s1 = inlined_call_operand.vmem [shape: f32[2,8,32], index: 1, kind: input, shape index: {}]
  %s2 = inlined_call_operand.vmem [shape: bf16[32,96], index: 2, kind: input, shape index: {}]
  %s3 = inlined_call_operand.vmem [shape: f32[1,96], index: 3, kind: input, shape index: {}]
  %s4 = inlined_call_operand.vmem [shape: bf16[4,8,32], index: 4, kind: input, shape index: {}]
  %s5 = inlined_call_operand.vmem [shape: f32[1,32], index: 5, kind: input, shape index: {}]
  %s6 = inlined_call_operand.vmem [shape: f32[1,32], index: 6, kind: input, shape index: {}]
  %s7 = inlined_call_operand.vmem [shape: f32[1,32], index: 7, kind: input, shape index: {}]
  %s8 = inlined_call_operand.hbm [shape: bf16[32,128], index: 8, kind: input, shape index: {}]
  %s9 = inlined_call_operand.vmem [shape: f32[1,128], index: 9, kind: input, shape index: {}]
  %s10 = inlined_call_operand.vmem [shape: bf16[64,32], index: 10, kind: input, shape index: {}]
  %s11 = inlined_call_operand.vmem [shape: f32[1,32], index: 11, kind: input, shape index: {}]
  %s12 = inlined_call_operand.hbm [shape: f32[2,8,32], index: 12, kind: output, shape index: {}]
  %s13 = sld [smem:[#allocation0]]
  $region81: #{tpu_custom_call.1} parent=0
    _
  %s15 = ssub.s32 1, %s13
  %s16 = scalar_select 0, %s15, %s13
  %18 = dma.hbm_to_smem %s0, 16, [#allocation3], [#allocation2]
  %19 = dma.done [#allocation2], 16
  %20 = sfence
  $region1: #{tpu_custom_call.1} parent=0
    #allocation4 [shape = 'u8[8192]{0}', space=vmem, size = 0x2000, scoped, tag = 'input window, operand 8, single buffered']
    #allocation5 [shape = 's32[2]{0}', space=sflag, size = 0x8, scoped, tag = 'scoped memory for tpu_custom_call.1']
    #allocation6 [shape = 's32[2]{0}', space=sflag, size = 0x8, scoped, tag = 'scoped memory for tpu_custom_call.1']
    #allocation7 [shape = 'u8[8192]{0}', space=vmem, size = 0x2000, scoped, tag = 'output window, operand 0']
    %21 = vsyncpa [#allocation5], 0
    %22 = vsyncpa [#allocation6], 0
    %s23 = scalar_lea.sflag [#allocation6], 1
    %24 = vsyncpa %s23, 0
    loop: start=0, step=1, limit=4
    $region2: #{tpu_custom_call.1} parent=1 // loop_pre_header
      _
    $region3: #{tpu_custom_call.1} parent=1 // loop_header
      %s26 = sphi 0, %s30
      %p27 = scmp.ge.s32.totalorder %s26, 4
      %s36 = sphi 0, %s38
      %s39 = sphi 0, %s36
      %s40 = sphi 0, %s39
      %s56 = sphi 0, %s40
      %s60 = sphi 0, %s60
      %s62 = sphi 0, %s60
      %s63 = sphi 0, %s62
      %s77 = sphi 0, %s63
      %s81 = sphi 0, %s81
      %s83 = sphi 0, %s81
      %s84 = sphi 0, %s83
      %s98 = sphi 0, %s84
      %s102 = sphi 0, %s102
      %s104 = sphi 0, %s102
      %s105 = sphi 0, %s104
      %s119 = sphi 0, %s105
      %s123 = sphi 0, %s123
      %s125 = sphi 0, %s123
      %s126 = sphi 0, %s125
      %s140 = sphi 0, %s126
      %s144 = sphi 0, %s144
      %s146 = sphi 0, %s144
      %s147 = sphi 0, %s146
      %s161 = sphi 0, %s147
      %s165 = sphi 0, %s165
      %s167 = sphi 0, %s165
      %s168 = sphi 0, %s167
      %s182 = sphi 0, %s168
      %s186 = sphi 0, %s186
      %s188 = sphi 0, %s186
      %s189 = sphi 0, %s188
      %s203 = sphi 0, %s189
      %s207 = sphi 0, %s207
      %s209 = sphi 0, %s207
      %s210 = sphi 0, %s209
      %s224 = sphi 0, %s210
      %s228 = sphi 0, %s228
      %s230 = sphi 0, %s228
      %s231 = sphi 0, %s230
      %s245 = sphi 0, %s231
      %s249 = sphi 0, %s249
      %s251 = sphi 0, %s249
      %s252 = sphi 0, %s251
      %s266 = sphi 0, %s252
      %s272 = sphi 0, %s274
      %s275 = sphi 0, %s272
      %s276 = sphi 0, %s275
      %s292 = sphi 0, %s276
    $region4: #{tpu_custom_call.1} parent=1 // loop_header_branch
      %29 = sbr.rel (%p27) target = $region8
    $region5: #{tpu_custom_call.1} parent=1 // loop_body
      %s31 = ssub.s32 %s26, 1
      %s32 = ssub.s32 %s26, 2
      %s33 = sadd.s32 %s26, 1
      %s34 = ssub.s32 %s26, %s33
      %p35 = scmp.eq.s32.totalorder %s34, 0
      %s37 = sadd.s32 %s36, 1
      %s38 = scalar_select %p35, %s36, %s37
      %p41 = pneg %p35
      %p42 = scmp.eq.s32.totalorder %s26, 1
      %p43 = por %p41, %p42
      %p44 = scmp.ne.s32.totalorder %s36, %s39
      %p45 = scmp.eq.s32.totalorder %s26, 0
      %p46 = por %p44, %p45
      %p47 = scmp.ne.s32.totalorder %s36, %s39
      %p48 = scmp.eq.s32.totalorder %s31, 1
      %p49 = por %p47, %p48
      %p50 = scmp.ne.s32.totalorder %s39, %s40
      %p51 = scmp.eq.s32.totalorder %s31, 0
      %p52 = por %p50, %p51
      %p53 = scmp.ne.s32.totalorder %s39, %s40
      %p54 = scmp.eq.s32.totalorder %s32, 1
      %p55 = por %p53, %p54
      %p57 = scmp.ne.s32.totalorder %s40, %s56
      %p58 = scmp.eq.s32.totalorder %s32, 0
      %p59 = por %p57, %p58
      %s61 = sadd.s32 %s60, 1
      %p64 = scmp.eq.s32.totalorder %s26, 1
      %p65 = scmp.ne.s32.totalorder %s60, %s62
      %p66 = scmp.eq.s32.totalorder %s26, 0
      %p67 = por %p65, %p66
      %p68 = scmp.ne.s32.totalorder %s60, %s62
      %p69 = scmp.eq.s32.totalorder %s31, 1
      %p70 = por %p68, %p69
      %p71 = scmp.ne.s32.totalorder %s62, %s63
      %p72 = scmp.eq.s32.totalorder %s31, 0
      %p73 = por %p71, %p72
      %p74 = scmp.ne.s32.totalorder %s62, %s63
      %p75 = scmp.eq.s32.totalorder %s32, 1
      %p76 = por %p74, %p75
      %p78 = scmp.ne.s32.totalorder %s63, %s77
      %p79 = scmp.eq.s32.totalorder %s32, 0
      %p80 = por %p78, %p79
      %s82 = sadd.s32 %s81, 1
      %p85 = scmp.eq.s32.totalorder %s26, 1
      %p86 = scmp.ne.s32.totalorder %s81, %s83
      %p87 = scmp.eq.s32.totalorder %s26, 0
      %p88 = por %p86, %p87
      %p89 = scmp.ne.s32.totalorder %s81, %s83
      %p90 = scmp.eq.s32.totalorder %s31, 1
      %p91 = por %p89, %p90
      %p92 = scmp.ne.s32.totalorder %s83, %s84
      %p93 = scmp.eq.s32.totalorder %s31, 0
      %p94 = por %p92, %p93
      %p95 = scmp.ne.s32.totalorder %s83, %s84
      %p96 = scmp.eq.s32.totalorder %s32, 1
      %p97 = por %p95, %p96
      %p99 = scmp.ne.s32.totalorder %s84, %s98
      %p100 = scmp.eq.s32.totalorder %s32, 0
      %p101 = por %p99, %p100
      %s103 = sadd.s32 %s102, 1
      %p106 = scmp.eq.s32.totalorder %s26, 1
      %p107 = scmp.ne.s32.totalorder %s102, %s104
      %p108 = scmp.eq.s32.totalorder %s26, 0
      %p109 = por %p107, %p108
      %p110 = scmp.ne.s32.totalorder %s102, %s104
      %p111 = scmp.eq.s32.totalorder %s31, 1
      %p112 = por %p110, %p111
      %p113 = scmp.ne.s32.totalorder %s104, %s105
      %p114 = scmp.eq.s32.totalorder %s31, 0
      %p115 = por %p113, %p114
      %p116 = scmp.ne.s32.totalorder %s104, %s105
      %p117 = scmp.eq.s32.totalorder %s32, 1
      %p118 = por %p116, %p117
      %p120 = scmp.ne.s32.totalorder %s105, %s119
      %p121 = scmp.eq.s32.totalorder %s32, 0
      %p122 = por %p120, %p121
      %s124 = sadd.s32 %s123, 1
      %p127 = scmp.eq.s32.totalorder %s26, 1
      %p128 = scmp.ne.s32.totalorder %s123, %s125
      %p129 = scmp.eq.s32.totalorder %s26, 0
      %p130 = por %p128, %p129
      %p131 = scmp.ne.s32.totalorder %s123, %s125
      %p132 = scmp.eq.s32.totalorder %s31, 1
      %p133 = por %p131, %p132
      %p134 = scmp.ne.s32.totalorder %s125, %s126
      %p135 = scmp.eq.s32.totalorder %s31, 0
      %p136 = por %p134, %p135
      %p137 = scmp.ne.s32.totalorder %s125, %s126
      %p138 = scmp.eq.s32.totalorder %s32, 1
      %p139 = por %p137, %p138
      %p141 = scmp.ne.s32.totalorder %s126, %s140
      %p142 = scmp.eq.s32.totalorder %s32, 0
      %p143 = por %p141, %p142
      %s145 = sadd.s32 %s144, 1
      %p148 = scmp.eq.s32.totalorder %s26, 1
      %p149 = scmp.ne.s32.totalorder %s144, %s146
      %p150 = scmp.eq.s32.totalorder %s26, 0
      %p151 = por %p149, %p150
      %p152 = scmp.ne.s32.totalorder %s144, %s146
      %p153 = scmp.eq.s32.totalorder %s31, 1
      %p154 = por %p152, %p153
      %p155 = scmp.ne.s32.totalorder %s146, %s147
      %p156 = scmp.eq.s32.totalorder %s31, 0
      %p157 = por %p155, %p156
      %p158 = scmp.ne.s32.totalorder %s146, %s147
      %p159 = scmp.eq.s32.totalorder %s32, 1
      %p160 = por %p158, %p159
      %p162 = scmp.ne.s32.totalorder %s147, %s161
      %p163 = scmp.eq.s32.totalorder %s32, 0
      %p164 = por %p162, %p163
      %s166 = sadd.s32 %s165, 1
      %p169 = scmp.eq.s32.totalorder %s26, 1
      %p170 = scmp.ne.s32.totalorder %s165, %s167
      %p171 = scmp.eq.s32.totalorder %s26, 0
      %p172 = por %p170, %p171
      %p173 = scmp.ne.s32.totalorder %s165, %s167
      %p174 = scmp.eq.s32.totalorder %s31, 1
      %p175 = por %p173, %p174
      %p176 = scmp.ne.s32.totalorder %s167, %s168
      %p177 = scmp.eq.s32.totalorder %s31, 0
      %p178 = por %p176, %p177
      %p179 = scmp.ne.s32.totalorder %s167, %s168
      %p180 = scmp.eq.s32.totalorder %s32, 1
      %p181 = por %p179, %p180
      %p183 = scmp.ne.s32.totalorder %s168, %s182
      %p184 = scmp.eq.s32.totalorder %s32, 0
      %p185 = por %p183, %p184
      %s187 = sadd.s32 %s186, 1
      %p190 = scmp.eq.s32.totalorder %s26, 1
      %p191 = scmp.ne.s32.totalorder %s186, %s188
      %p192 = scmp.eq.s32.totalorder %s26, 0
      %p193 = por %p191, %p192
      %p194 = scmp.ne.s32.totalorder %s186, %s188
      %p195 = scmp.eq.s32.totalorder %s31, 1
      %p196 = por %p194, %p195
      %p197 = scmp.ne.s32.totalorder %s188, %s189
      %p198 = scmp.eq.s32.totalorder %s31, 0
      %p199 = por %p197, %p198
      %p200 = scmp.ne.s32.totalorder %s188, %s189
      %p201 = scmp.eq.s32.totalorder %s32, 1
      %p202 = por %p200, %p201
      %p204 = scmp.ne.s32.totalorder %s189, %s203
      %p205 = scmp.eq.s32.totalorder %s32, 0
      %p206 = por %p204, %p205
      %s208 = sadd.s32 %s207, 1
      %p211 = scmp.eq.s32.totalorder %s26, 1
      %p212 = scmp.ne.s32.totalorder %s207, %s209
      %p213 = scmp.eq.s32.totalorder %s26, 0
      %p214 = por %p212, %p213
      %p215 = scmp.ne.s32.totalorder %s207, %s209
      %p216 = scmp.eq.s32.totalorder %s31, 1
      %p217 = por %p215, %p216
      %p218 = scmp.ne.s32.totalorder %s209, %s210
      %p219 = scmp.eq.s32.totalorder %s31, 0
      %p220 = por %p218, %p219
      %p221 = scmp.ne.s32.totalorder %s209, %s210
      %p222 = scmp.eq.s32.totalorder %s32, 1
      %p223 = por %p221, %p222
      %p225 = scmp.ne.s32.totalorder %s210, %s224
      %p226 = scmp.eq.s32.totalorder %s32, 0
      %p227 = por %p225, %p226
      %s229 = sadd.s32 %s228, 1
      %p232 = scmp.eq.s32.totalorder %s26, 1
      %p233 = scmp.ne.s32.totalorder %s228, %s230
      %p234 = scmp.eq.s32.totalorder %s26, 0
      %p235 = por %p233, %p234
      %p236 = scmp.ne.s32.totalorder %s228, %s230
      %p237 = scmp.eq.s32.totalorder %s31, 1
      %p238 = por %p236, %p237
      %p239 = scmp.ne.s32.totalorder %s230, %s231
      %p240 = scmp.eq.s32.totalorder %s31, 0
      %p241 = por %p239, %p240
      %p242 = scmp.ne.s32.totalorder %s230, %s231
      %p243 = scmp.eq.s32.totalorder %s32, 1
      %p244 = por %p242, %p243
      %p246 = scmp.ne.s32.totalorder %s231, %s245
      %p247 = scmp.eq.s32.totalorder %s32, 0
      %p248 = por %p246, %p247
      %s250 = sadd.s32 %s249, 1
      %p253 = scmp.eq.s32.totalorder %s26, 1
      %p254 = scmp.ne.s32.totalorder %s249, %s251
      %p255 = scmp.eq.s32.totalorder %s26, 0
      %p256 = por %p254, %p255
      %p257 = scmp.ne.s32.totalorder %s249, %s251
      %p258 = scmp.eq.s32.totalorder %s31, 1
      %p259 = por %p257, %p258
      %p260 = scmp.ne.s32.totalorder %s251, %s252
      %p261 = scmp.eq.s32.totalorder %s31, 0
      %p262 = por %p260, %p261
      %p263 = scmp.ne.s32.totalorder %s251, %s252
      %p264 = scmp.eq.s32.totalorder %s32, 1
      %p265 = por %p263, %p264
      %p267 = scmp.ne.s32.totalorder %s252, %s266
      %p268 = scmp.eq.s32.totalorder %s32, 0
      %p269 = por %p267, %p268
      %s270 = ssub.s32 %s26, %s33
      %p271 = scmp.eq.s32.totalorder %s270, 0
      %s273 = sadd.s32 %s272, 1
      %s274 = scalar_select %p271, %s272, %s273
      %p277 = pneg %p271
      %p278 = scmp.eq.s32.totalorder %s26, 1
      %p279 = por %p277, %p278
      %p280 = scmp.ne.s32.totalorder %s272, %s275
      %p281 = scmp.eq.s32.totalorder %s26, 0
      %p282 = por %p280, %p281
      %p283 = scmp.ne.s32.totalorder %s272, %s275
      %p284 = scmp.eq.s32.totalorder %s31, 1
      %p285 = por %p283, %p284
      %p286 = scmp.ne.s32.totalorder %s275, %s276
      %p287 = scmp.eq.s32.totalorder %s31, 0
      %p288 = por %p286, %p287
      %p289 = scmp.ne.s32.totalorder %s275, %s276
      %p290 = scmp.eq.s32.totalorder %s32, 1
      %p291 = por %p289, %p290
      %p293 = scmp.ne.s32.totalorder %s276, %s292
      %p294 = scmp.eq.s32.totalorder %s32, 0
      %p295 = por %p293, %p294
      %p296 = scmp.le.s32.totalorder 1, %s26
      %p297 = scmp.lt.s32.totalorder %s26, 3
      %p298 = pnand %p296, %p297
      %p299 = pneg %p298
      // Predicated region
      $region9: #{tpu_custom_call.1} parent=5 // pred_check
        _
      $region10: #{tpu_custom_call.1} parent=5 // pred_check_branch
        %301 = sbr.rel (%p298) target = $region12
      $region11: #{tpu_custom_call.1} parent=5 // pred_region
        %s302 = ssub.s32 %s26, 1
        // Predicated region
        $region13: #{tpu_custom_call.1} parent=11 // pred_check
          %p303 = pneg %p73
        $region14: #{tpu_custom_call.1} parent=11 // pred_check_branch
          %305 = sbr.rel (%p303) target = $region16
        $region15: #{tpu_custom_call.1} parent=11 // pred_region
          _
        $region16: #{tpu_custom_call.1} parent=11 // pred_fallthru
          _
        // Predicated region
        $region17: #{tpu_custom_call.1} parent=11 // pred_check
          %p306 = pneg %p94
        $region18: #{tpu_custom_call.1} parent=11 // pred_check_branch
          %308 = sbr.rel (%p306) target = $region20
        $region19: #{tpu_custom_call.1} parent=11 // pred_region
          _
        $region20: #{tpu_custom_call.1} parent=11 // pred_fallthru
          _
        // Predicated region
        $region21: #{tpu_custom_call.1} parent=11 // pred_check
          %p309 = pneg %p115
        $region22: #{tpu_custom_call.1} parent=11 // pred_check_branch
          %311 = sbr.rel (%p309) target = $region24
        $region23: #{tpu_custom_call.1} parent=11 // pred_region
          _
        $region24: #{tpu_custom_call.1} parent=11 // pred_fallthru
          _
        // Predicated region
        $region25: #{tpu_custom_call.1} parent=11 // pred_check
          %p312 = pneg %p136
        $region26: #{tpu_custom_call.1} parent=11 // pred_check_branch
          %314 = sbr.rel (%p312) target = $region28
        $region27: #{tpu_custom_call.1} parent=11 // pred_region
          _
        $region28: #{tpu_custom_call.1} parent=11 // pred_fallthru
          _
        // Predicated region
        $region29: #{tpu_custom_call.1} parent=11 // pred_check
          %p315 = pneg %p157
        $region30: #{tpu_custom_call.1} parent=11 // pred_check_branch
          %317 = sbr.rel (%p315) target = $region32
        $region31: #{tpu_custom_call.1} parent=11 // pred_region
          _
        $region32: #{tpu_custom_call.1} parent=11 // pred_fallthru
          _
        // Predicated region
        $region33: #{tpu_custom_call.1} parent=11 // pred_check
          %p318 = pneg %p178
        $region34: #{tpu_custom_call.1} parent=11 // pred_check_branch
          %320 = sbr.rel (%p318) target = $region36
        $region35: #{tpu_custom_call.1} parent=11 // pred_region
          _
        $region36: #{tpu_custom_call.1} parent=11 // pred_fallthru
          _
        // Predicated region
        $region37: #{tpu_custom_call.1} parent=11 // pred_check
          %p321 = pneg %p199
        $region38: #{tpu_custom_call.1} parent=11 // pred_check_branch
          %323 = sbr.rel (%p321) target = $region40
        $region39: #{tpu_custom_call.1} parent=11 // pred_region
          %s325 = ssub.s32 256, 256
          %326 = vsyncadd [#allocation5], %s325
          %s327 = sshll.u32 [#allocation4], 4
          %s328 = int_to_ptr.vmem [resolvable:$true] %s327
          %333 = dma.hbm_to_vmem [thread:$0]  %s8, 256, %s328, [#allocation5], 64, 64, 4
        $region40: #{tpu_custom_call.1} parent=11 // pred_fallthru
          _
        // Predicated region
        $region41: #{tpu_custom_call.1} parent=11 // pred_check
          %p334 = pneg %p220
        $region42: #{tpu_custom_call.1} parent=11 // pred_check_branch
          %336 = sbr.rel (%p334) target = $region44
        $region43: #{tpu_custom_call.1} parent=11 // pred_region
          _
        $region44: #{tpu_custom_call.1} parent=11 // pred_fallthru
          _
        // Predicated region
        $region45: #{tpu_custom_call.1} parent=11 // pred_check
          %p337 = pneg %p241
        $region46: #{tpu_custom_call.1} parent=11 // pred_check_branch
          %339 = sbr.rel (%p337) target = $region48
        $region47: #{tpu_custom_call.1} parent=11 // pred_region
          _
        $region48: #{tpu_custom_call.1} parent=11 // pred_fallthru
          _
        // Predicated region
        $region49: #{tpu_custom_call.1} parent=11 // pred_check
          %p340 = pneg %p262
        $region50: #{tpu_custom_call.1} parent=11 // pred_check_branch
          %342 = sbr.rel (%p340) target = $region52
        $region51: #{tpu_custom_call.1} parent=11 // pred_region
          _
        $region52: #{tpu_custom_call.1} parent=11 // pred_fallthru
          _
      $region12: #{tpu_custom_call.1} parent=5 // pred_fallthru
        _
      %p343 = scmp.lt.s32.totalorder %s26, 2
      // Predicated region
      $region53: #{tpu_custom_call.1} parent=5 // pred_check
        %p344 = pneg %p343
      $region54: #{tpu_custom_call.1} parent=5 // pred_check_branch
        %346 = sbr.rel (%p344) target = $region56
      $region55: #{tpu_custom_call.1} parent=5 // pred_region
        // Predicated region
        $region57: #{tpu_custom_call.1} parent=55 // pred_check
          %p347 = pneg %p46
        $region58: #{tpu_custom_call.1} parent=55 // pred_check_branch
          %349 = sbr.rel (%p347) target = $region60
        $region59: #{tpu_custom_call.1} parent=55 // pred_region
          %p350 = scmp.lt.s32.totalorder %s26, 1
          %s351 = scalar_select %p350, %s26, 1
          %s352 = smul.addr %s351, 8
          %s353 = scalar_lea.vmem %s1, %s352
        $region60: #{tpu_custom_call.1} parent=55 // pred_fallthru
          _
      $region56: #{tpu_custom_call.1} parent=5 // pred_fallthru
        _
      %p354 = scmp.le.s32.totalorder 1, %s26
      %p355 = scmp.lt.s32.totalorder %s26, 3
      %p356 = pnand %p354, %p355
      %p357 = pneg %p356
      // Predicated region
      $region61: #{tpu_custom_call.1} parent=5 // pred_check
        _
      $region62: #{tpu_custom_call.1} parent=5 // pred_check_branch
        %359 = sbr.rel (%p356) target = $region64
      $region63: #{tpu_custom_call.1} parent=5 // pred_region
        %s360 = ssub.s32 %s26, 1
        // Predicated region
        $region65: #{tpu_custom_call.1} parent=63 // pred_check
          %p361 = pneg %p199
        $region66: #{tpu_custom_call.1} parent=63 // pred_check_branch
          %363 = sbr.rel (%p361) target = $region68
        $region67: #{tpu_custom_call.1} parent=63 // pred_region
          %364 = dma.done [#allocation5], 256
        $region68: #{tpu_custom_call.1} parent=63 // pred_fallthru
          _
        %p365 = scmp.lt.s32.totalorder %s31, 1
        %s366 = scalar_select %p365, %s31, 1
        %s367 = smul.addr %s366, 8
        %s368 = scalar_lea.vmem %s1, %s367
        %p369 = pneg %p52
        %p370 = pneg %p49
        %p371 = pneg %p73
        %p372 = pneg %p70
        %p373 = pneg %p94
        %p374 = pneg %p91
        %p375 = pneg %p115
        %p376 = pneg %p112
        %p377 = pneg %p136
        %p378 = pneg %p133
        %p379 = pneg %p157
        %p380 = pneg %p154
        %p381 = pneg %p178
        %p382 = pneg %p175
        %p383 = pneg %p199
        %p384 = pneg %p196
        %p385 = pneg %p220
        %p386 = pneg %p217
        %p387 = pneg %p241
        %p388 = pneg %p238
        %p389 = pneg %p262
        %p390 = pneg %p259
        %p391 = pneg %p288
        %p392 = pneg %p285
        %s393 = sand.u32 %s275, 1
        %s394 = scalar_lea.sflag [#allocation6], %s393
        %s395 = sand.u32 %s275, 1
        %s396 = smul.addr %s395, 8
        %s397 = scalar_lea.vmem [#allocation7], %s396
        %p398 = scmp.lt.s32.totalorder %s31, 1
        %s399 = scalar_select %p398, %s31, 1
        %s400 = smul.addr %s399, 8
        %s401 = scalar_lea.vmem %s1, %s400
        %v403 = vld [vmem:[%s401] sm:$0xff]
        %v404 = vpack.c.bf16 %v403, %v403
        %v405 = vld [vmem:[%s2] sm:$0xf]
        %v406 = vld [vmem:[%s2 + $0x4] sm:$0xf]
        %v407 = vld [vmem:[%s2 + $0x8] sm:$0xf]
        %v408 = vld [vmem:[%s2 + $0xc] sm:$0xf]
        %v409 = vld [vmem:[%s3] sm:$0x1]
        %v411 = vlaneseq
        %v412 = vshrl.u32 %v411, 7
        %v413 = vsub.s32 0, %v412
        %v414 = vrot.slane %v409, %v413
        %v420 = vunpack.c.l.b16 %v405
        %v421 = vunpack.c.l.b16 %v406
        %v422 = vunpack.c.l.b16 %v407
        %v423 = vunpack.c.l.b16 %v408
        %v424 = vpack.c.b16 %v421, %v420
        %v425 = vpack.c.b16 %v423, %v422
        %vm428 = vcmask 261120
        %v430 = vsel %vm428, %v404, 0
        %432 = vmatprep.subr.bf16.mxu0 0
        %433 = vmatpush1.bf16.msra.mxu0 %v424
        %434 = vmatprep.subr.bf16.mxu0 0
        %435 = vmatpush1.bf16.msra.mxu0 %v425
        %436 = vmatprep.subr.bf16.mxu0 0
        %437 = vmatpush1.bf16.msra.mxu0 0
        %438 = vmatprep.subr.bf16.mxu0 0
        %439 = vmatpush1.bf16.msra.mxu0 0
        %440 = vmatprep.subr.bf16.mxu0 0
        %441 = vmatpush1.bf16.msra.mxu0 0
        %442 = vmatprep.subr.bf16.mxu0 0
        %443 = vmatpush1.bf16.msra.mxu0 0
        %444 = vmatprep.subr.bf16.mxu0 0
        %445 = vmatpush1.bf16.msra.mxu0 0
        %446 = vmatprep.subr.bf16.mxu0 0
        %447 = vmatpush1.bf16.msra.mxu0 0
        %448 = vmatprep.subr.bf16.mxu0 0
        %449 = vmatpush1.bf16.msra.mxu0 0
        %450 = vmatprep.subr.bf16.mxu0 0
        %451 = vmatpush1.bf16.msra.mxu0 0
        %452 = vmatprep.subr.bf16.mxu0 0
        %453 = vmatpush1.bf16.msra.mxu0 0
        %454 = vmatprep.subr.bf16.mxu0 0
        %455 = vmatpush1.bf16.msra.mxu0 0
        %456 = vmatprep.subr.bf16.mxu0 0
        %457 = vmatpush1.bf16.msra.mxu0 0
        %458 = vmatprep.subr.bf16.mxu0 0
        %459 = vmatpush1.bf16.msra.mxu0 0
        %460 = vmatprep.subr.bf16.mxu0 0
        %461 = vmatpush1.bf16.msra.mxu0 0
        %462 = vmatprep.subr.bf16.mxu0 0
        %463 = vmatpush1.bf16.msra.mxu0 0
        %464 = vmatprep.mubr.bf16.mxu0 0
        %465 = vmatmul.mubr.bf16.gmra.mrb[0].mxu0 %v430
        %v466 = vpop.f32.mrb[0].mxu0
        %v467 = vadd.f32 %v414, %v466
        %v468 = vpop.f32.mrb[0].mxu0
        %v469 = vpop.f32.mrb[0].mxu0
        %v470 = vpop.f32.mrb[0].mxu0
        %471 = vdwg.mxu0
        %v472 = vlaneseq
        %v473 = vand.u32 %v472, 127
        %s474 = sld [smem:[#allocation3 + %s31]]
        %v475 = vstv %s474
        %vm476 = vcmp.lt.s32.totalorder %v473, %v475
        %v477 = vsel %vm476, 0.0, -1e+30
        %v478 = vpack.c.bf16 %v467, %v467
        %480 = vrot.lane.b32.xlu0 %v478, 96
        %v481 = vpop.permute.xlu0 %480
        %vm482 = vcmask 64512
        %v484 = vsel %vm482, %v478, 0
        %v487 = vsel %vm482, %v481, 0
        %489 = vmatprep.subr.bf16.mxu0 0
        %490 = vmatpush1.bf16.xpose.msra.mxu0 %v487
        %491 = vmatprep.subr.bf16.mxu0 0
        %492 = vmatpush1.bf16.xpose.msra.mxu0 0
        %493 = vmatprep.subr.bf16.mxu0 0
        %494 = vmatpush1.bf16.xpose.msra.mxu0 0
        %495 = vmatprep.subr.bf16.mxu0 0
        %496 = vmatpush1.bf16.xpose.msra.mxu0 0
        %497 = vmatprep.subr.bf16.mxu0 0
        %498 = vmatpush1.bf16.xpose.msra.mxu0 0
        %499 = vmatprep.subr.bf16.mxu0 0
        %500 = vmatpush1.bf16.xpose.msra.mxu0 0
        %501 = vmatprep.subr.bf16.mxu0 0
        %502 = vmatpush1.bf16.xpose.msra.mxu0 0
        %503 = vmatprep.subr.bf16.mxu0 0
        %504 = vmatpush1.bf16.xpose.msra.mxu0 0
        %505 = vmatprep.subr.bf16.mxu0 0
        %506 = vmatpush1.bf16.xpose.msra.mxu0 0
        %507 = vmatprep.subr.bf16.mxu0 0
        %508 = vmatpush1.bf16.xpose.msra.mxu0 0
        %509 = vmatprep.subr.bf16.mxu0 0
        %510 = vmatpush1.bf16.xpose.msra.mxu0 0
        %511 = vmatprep.subr.bf16.mxu0 0
        %512 = vmatpush1.bf16.xpose.msra.mxu0 0
        %513 = vmatprep.subr.bf16.mxu0 0
        %514 = vmatpush1.bf16.xpose.msra.mxu0 0
        %515 = vmatprep.subr.bf16.mxu0 0
        %516 = vmatpush1.bf16.xpose.msra.mxu0 0
        %517 = vmatprep.subr.bf16.mxu0 0
        %518 = vmatpush1.bf16.xpose.msra.mxu0 0
        %519 = vmatprep.subr.bf16.mxu0 0
        %520 = vmatpush1.bf16.xpose.msra.mxu0 0
        %521 = vmatprep.mubr.bf16.mxu0 0
        %522 = vmatmul.mubr.bf16.gmra.mrb[0].mxu0 %v484
        %v523 = vpop.f32.mrb[0].mxu0
        %v524 = vadd.f32 %v477, %v523
        %v525 = vpop.f32.mrb[0].mxu0
        %v526 = vpop.f32.mrb[0].mxu0
        %v527 = vpop.f32.mrb[0].mxu0
        %528 = vdwg.mxu0
        %v529 = vsel %vm482, %v524, -inf
        %530 = vmax.xlane.f32.xlu0 %v529
        %v531 = vpop.xlane.xlu0 %530
        %v532 = vsub.f32 %v524, %v531
        %v533 = vmul.f32 %v532, 1.442695
        %v534 = vpow.pop %v533
        %v535 = vsel %vm482, %v534, 0.0
        %536 = vadd.xlane.f32.xlu0 %v535
        %v537 = vpop.xlane.xlu0 %536
        %v538 = vrcp.pop %v537
        %v539 = vmul.f32 %v534, %v538
        %v540 = vpack.c.bf16 %v539, %v539
        %541 = vrot.lane.b32.xlu0 %v478, 64
        %v542 = vpop.permute.xlu0 %541
        %v544 = vsel %vm482, %v540, 0
        %vm546 = vcmask 1043456
        %v548 = vsel %vm546, %v542, 0
        %550 = vmatprep.subr.bf16.mxu0 0
        %551 = vmatpush1.bf16.msra.mxu0 %v548
        %552 = vmatprep.subr.bf16.mxu0 0
        %553 = vmatpush1.bf16.msra.mxu0 0
        %554 = vmatprep.subr.bf16.mxu0 0
        %555 = vmatpush1.bf16.msra.mxu0 0
        %556 = vmatprep.subr.bf16.mxu0 0
        %557 = vmatpush1.bf16.msra.mxu0 0
        %558 = vmatprep.subr.bf16.mxu0 0
        %559 = vmatpush1.bf16.msra.mxu0 0
        %560 = vmatprep.subr.bf16.mxu0 0
        %561 = vmatpush1.bf16.msra.mxu0 0
        %562 = vmatprep.subr.bf16.mxu0 0
        %563 = vmatpush1.bf16.msra.mxu0 0
        %564 = vmatprep.subr.bf16.mxu0 0
        %565 = vmatpush1.bf16.msra.mxu0 0
        %566 = vmatprep.subr.bf16.mxu0 0
        %567 = vmatpush1.bf16.msra.mxu0 0
        %568 = vmatprep.subr.bf16.mxu0 0
        %569 = vmatpush1.bf16.msra.mxu0 0
        %570 = vmatprep.subr.bf16.mxu0 0
        %571 = vmatpush1.bf16.msra.mxu0 0
        %572 = vmatprep.subr.bf16.mxu0 0
        %573 = vmatpush1.bf16.msra.mxu0 0
        %574 = vmatprep.subr.bf16.mxu0 0
        %575 = vmatpush1.bf16.msra.mxu0 0
        %576 = vmatprep.subr.bf16.mxu0 0
        %577 = vmatpush1.bf16.msra.mxu0 0
        %578 = vmatprep.subr.bf16.mxu0 0
        %579 = vmatpush1.bf16.msra.mxu0 0
        %580 = vmatprep.subr.bf16.mxu0 0
        %581 = vmatpush1.bf16.msra.mxu0 0
        %582 = vmatprep.mubr.bf16.mxu0 0
        %583 = vmatmul.mubr.bf16.gmra.mrb[0].mxu0 %v544
        %v584 = vpop.f32.mrb[0].mxu0
        %v585 = vadd.f32 0.0, %v584
        %v586 = vpop.f32.mrb[0].mxu0
        %v587 = vpop.f32.mrb[0].mxu0
        %v588 = vpop.f32.mrb[0].mxu0
        %589 = vdwg.mxu0
        %v590 = vpack.c.bf16 %v585, %v585
        %v591 = vld [vmem:[%s4] sm:$0xf]
        %592 = vrot.lane.b32.xlu0 %v478, 120
        %v593 = vpop.permute.xlu0 %592
        %594 = vrot.lane.b32.xlu0 %v478, 88
        %v595 = vpop.permute.xlu0 %594
        %v597 = vsel %vm482, %v593, 0
        %v600 = vsel %vm482, %v595, 0
        %602 = vmatprep.subr.bf16.mxu0 0
        %603 = vmatpush1.bf16.xpose.msra.mxu0 %v600
        %604 = vmatprep.subr.bf16.mxu0 0
        %605 = vmatpush1.bf16.xpose.msra.mxu0 0
        %606 = vmatprep.subr.bf16.mxu0 0
        %607 = vmatpush1.bf16.xpose.msra.mxu0 0
        %608 = vmatprep.subr.bf16.mxu0 0
        %609 = vmatpush1.bf16.xpose.msra.mxu0 0
        %610 = vmatprep.subr.bf16.mxu0 0
        %611 = vmatpush1.bf16.xpose.msra.mxu0 0
        %612 = vmatprep.subr.bf16.mxu0 0
        %613 = vmatpush1.bf16.xpose.msra.mxu0 0
        %614 = vmatprep.subr.bf16.mxu0 0
        %615 = vmatpush1.bf16.xpose.msra.mxu0 0
        %616 = vmatprep.subr.bf16.mxu0 0
        %617 = vmatpush1.bf16.xpose.msra.mxu0 0
        %618 = vmatprep.subr.bf16.mxu0 0
        %619 = vmatpush1.bf16.xpose.msra.mxu0 0
        %620 = vmatprep.subr.bf16.mxu0 0
        %621 = vmatpush1.bf16.xpose.msra.mxu0 0
        %622 = vmatprep.subr.bf16.mxu0 0
        %623 = vmatpush1.bf16.xpose.msra.mxu0 0
        %624 = vmatprep.subr.bf16.mxu0 0
        %625 = vmatpush1.bf16.xpose.msra.mxu0 0
        %626 = vmatprep.subr.bf16.mxu0 0
        %627 = vmatpush1.bf16.xpose.msra.mxu0 0
        %628 = vmatprep.subr.bf16.mxu0 0
        %629 = vmatpush1.bf16.xpose.msra.mxu0 0
        %630 = vmatprep.subr.bf16.mxu0 0
        %631 = vmatpush1.bf16.xpose.msra.mxu0 0
        %632 = vmatprep.subr.bf16.mxu0 0
        %633 = vmatpush1.bf16.xpose.msra.mxu0 0
        %634 = vmatprep.mubr.bf16.mxu0 0
        %635 = vmatmul.mubr.bf16.gmra.mrb[0].mxu0 %v597
        %v636 = vpop.f32.mrb[0].mxu0
        %v637 = vadd.f32 %v477, %v636
        %v638 = vpop.f32.mrb[0].mxu0
        %v639 = vpop.f32.mrb[0].mxu0
        %v640 = vpop.f32.mrb[0].mxu0
        %641 = vdwg.mxu0
        %v642 = vsel %vm482, %v637, -inf
        %643 = vmax.xlane.f32.xlu0 %v642
        %v644 = vpop.xlane.xlu0 %643
        %v645 = vsub.f32 %v637, %v644
        %v646 = vmul.f32 %v645, 1.442695
        %v647 = vpow.pop %v646
        %v648 = vsel %vm482, %v647, 0.0
        %649 = vadd.xlane.f32.xlu0 %v648
        %v650 = vpop.xlane.xlu0 %649
        %v651 = vrcp.pop %v650
        %v652 = vmul.f32 %v647, %v651
        %v653 = vpack.c.bf16 %v652, %v652
        %654 = vrot.lane.b32.xlu0 %v478, 56
        %v655 = vpop.permute.xlu0 %654
        %v657 = vsel %vm482, %v653, 0
        %v660 = vsel %vm546, %v655, 0
        %662 = vmatprep.subr.bf16.mxu0 0
        %663 = vmatpush1.bf16.msra.mxu0 %v660
        %664 = vmatprep.subr.bf16.mxu0 0
        %665 = vmatpush1.bf16.msra.mxu0 0
        %666 = vmatprep.subr.bf16.mxu0 0
        %667 = vmatpush1.bf16.msra.mxu0 0
        %668 = vmatprep.subr.bf16.mxu0 0
        %669 = vmatpush1.bf16.msra.mxu0 0
        %670 = vmatprep.subr.bf16.mxu0 0
        %671 = vmatpush1.bf16.msra.mxu0 0
        %672 = vmatprep.subr.bf16.mxu0 0
        %673 = vmatpush1.bf16.msra.mxu0 0
        %674 = vmatprep.subr.bf16.mxu0 0
        %675 = vmatpush1.bf16.msra.mxu0 0
        %676 = vmatprep.subr.bf16.mxu0 0
        %677 = vmatpush1.bf16.msra.mxu0 0
        %678 = vmatprep.subr.bf16.mxu0 0
        %679 = vmatpush1.bf16.msra.mxu0 0
        %680 = vmatprep.subr.bf16.mxu0 0
        %681 = vmatpush1.bf16.msra.mxu0 0
        %682 = vmatprep.subr.bf16.mxu0 0
        %683 = vmatpush1.bf16.msra.mxu0 0
        %684 = vmatprep.subr.bf16.mxu0 0
        %685 = vmatpush1.bf16.msra.mxu0 0
        %686 = vmatprep.subr.bf16.mxu0 0
        %687 = vmatpush1.bf16.msra.mxu0 0
        %688 = vmatprep.subr.bf16.mxu0 0
        %689 = vmatpush1.bf16.msra.mxu0 0
        %690 = vmatprep.subr.bf16.mxu0 0
        %691 = vmatpush1.bf16.msra.mxu0 0
        %692 = vmatprep.subr.bf16.mxu0 0
        %693 = vmatpush1.bf16.msra.mxu0 0
        %694 = vmatprep.mubr.bf16.mxu0 0
        %695 = vmatmul.mubr.bf16.gmra.mrb[0].mxu0 %v657
        %v696 = vpop.f32.mrb[0].mxu0
        %v697 = vadd.f32 0.0, %v696
        %v698 = vpop.f32.mrb[0].mxu0
        %v699 = vpop.f32.mrb[0].mxu0
        %v700 = vpop.f32.mrb[0].mxu0
        %701 = vdwg.mxu0
        %v702 = vpack.c.bf16 %v697, %v697
        %s703 = scalar_lea.vmem %s4, 4
        %v704 = vld [vmem:[%s703] sm:$0xf]
        %v706 = vsel %vm482, %v702, 0
        %v709 = vsel %vm546, %v704, 0
        %711 = vmatprep.subr.bf16.mxu0 0
        %712 = vmatpush1.bf16.msra.mxu0 %v709
        %713 = vmatprep.subr.bf16.mxu0 0
        %714 = vmatpush1.bf16.msra.mxu0 0
        %715 = vmatprep.subr.bf16.mxu0 0
        %716 = vmatpush1.bf16.msra.mxu0 0
        %717 = vmatprep.subr.bf16.mxu0 0
        %718 = vmatpush1.bf16.msra.mxu0 0
        %719 = vmatprep.subr.bf16.mxu0 0
        %720 = vmatpush1.bf16.msra.mxu0 0
        %721 = vmatprep.subr.bf16.mxu0 0
        %722 = vmatpush1.bf16.msra.mxu0 0
        %723 = vmatprep.subr.bf16.mxu0 0
        %724 = vmatpush1.bf16.msra.mxu0 0
        %725 = vmatprep.subr.bf16.mxu0 0
        %726 = vmatpush1.bf16.msra.mxu0 0
        %727 = vmatprep.subr.bf16.mxu0 0
        %728 = vmatpush1.bf16.msra.mxu0 0
        %729 = vmatprep.subr.bf16.mxu0 0
        %730 = vmatpush1.bf16.msra.mxu0 0
        %731 = vmatprep.subr.bf16.mxu0 0
        %732 = vmatpush1.bf16.msra.mxu0 0
        %733 = vmatprep.subr.bf16.mxu0 0
        %734 = vmatpush1.bf16.msra.mxu0 0
        %735 = vmatprep.subr.bf16.mxu0 0
        %736 = vmatpush1.bf16.msra.mxu0 0
        %737 = vmatprep.subr.bf16.mxu0 0
        %738 = vmatpush1.bf16.msra.mxu0 0
        %739 = vmatprep.subr.bf16.mxu0 0
        %740 = vmatpush1.bf16.msra.mxu0 0
        %741 = vmatprep.subr.bf16.mxu0 0
        %742 = vmatpush1.bf16.msra.mxu0 0
        %743 = vmatprep.mubr.bf16.mxu0 0
        %744 = vmatmul.mubr.bf16.gmra.mrb[0].mxu0 %v706
        %v745 = vpop.f32.mrb[0].mxu0
        %v746 = vadd.f32 0.0, %v745
        %v747 = vpop.f32.mrb[0].mxu0
        %v748 = vpop.f32.mrb[0].mxu0
        %v749 = vpop.f32.mrb[0].mxu0
        %750 = vdwg.mxu0
        %v752 = vsel %vm482, %v590, 0
        %v755 = vsel %vm546, %v591, 0
        %757 = vmatprep.subr.bf16.mxu0 0
        %758 = vmatpush1.bf16.msra.mxu0 %v755
        %759 = vmatprep.subr.bf16.mxu0 0
        %760 = vmatpush1.bf16.msra.mxu0 0
        %761 = vmatprep.subr.bf16.mxu0 0
        %762 = vmatpush1.bf16.msra.mxu0 0
        %763 = vmatprep.subr.bf16.mxu0 0
        %764 = vmatpush1.bf16.msra.mxu0 0
        %765 = vmatprep.subr.bf16.mxu0 0
        %766 = vmatpush1.bf16.msra.mxu0 0
        %767 = vmatprep.subr.bf16.mxu0 0
        %768 = vmatpush1.bf16.msra.mxu0 0
        %769 = vmatprep.subr.bf16.mxu0 0
        %770 = vmatpush1.bf16.msra.mxu0 0
        %771 = vmatprep.subr.bf16.mxu0 0
        %772 = vmatpush1.bf16.msra.mxu0 0
        %773 = vmatprep.subr.bf16.mxu0 0
        %774 = vmatpush1.bf16.msra.mxu0 0
        %775 = vmatprep.subr.bf16.mxu0 0
        %776 = vmatpush1.bf16.msra.mxu0 0
        %777 = vmatprep.subr.bf16.mxu0 0
        %778 = vmatpush1.bf16.msra.mxu0 0
        %779 = vmatprep.subr.bf16.mxu0 0
        %780 = vmatpush1.bf16.msra.mxu0 0
        %781 = vmatprep.subr.bf16.mxu0 0
        %782 = vmatpush1.bf16.msra.mxu0 0
        %783 = vmatprep.subr.bf16.mxu0 0
        %784 = vmatpush1.bf16.msra.mxu0 0
        %785 = vmatprep.subr.bf16.mxu0 0
        %786 = vmatpush1.bf16.msra.mxu0 0
        %787 = vmatprep.subr.bf16.mxu0 0
        %788 = vmatpush1.bf16.msra.mxu0 0
        %789 = vmatprep.mubr.bf16.mxu0 0
        %790 = vmatmul.mubr.bf16.gmra.mrb[0].mxu0 %v752
        %v791 = vpop.f32.mrb[0].mxu0
        %v792 = vadd.f32 %v746, %v791
        %v793 = vpop.f32.mrb[0].mxu0
        %v794 = vpop.f32.mrb[0].mxu0
        %v795 = vpop.f32.mrb[0].mxu0
        %796 = vdwg.mxu0
        %797 = vrot.lane.b32.xlu0 %v478, 112
        %v798 = vpop.permute.xlu0 %797
        %799 = vrot.lane.b32.xlu0 %v478, 80
        %v800 = vpop.permute.xlu0 %799
        %v802 = vsel %vm482, %v798, 0
        %v805 = vsel %vm482, %v800, 0
        %807 = vmatprep.subr.bf16.mxu0 0
        %808 = vmatpush1.bf16.xpose.msra.mxu0 %v805
        %809 = vmatprep.subr.bf16.mxu0 0
        %810 = vmatpush1.bf16.xpose.msra.mxu0 0
        %811 = vmatprep.subr.bf16.mxu0 0
        %812 = vmatpush1.bf16.xpose.msra.mxu0 0
        %813 = vmatprep.subr.bf16.mxu0 0
        %814 = vmatpush1.bf16.xpose.msra.mxu0 0
        %815 = vmatprep.subr.bf16.mxu0 0
        %816 = vmatpush1.bf16.xpose.msra.mxu0 0
        %817 = vmatprep.subr.bf16.mxu0 0
        %818 = vmatpush1.bf16.xpose.msra.mxu0 0
        %819 = vmatprep.subr.bf16.mxu0 0
        %820 = vmatpush1.bf16.xpose.msra.mxu0 0
        %821 = vmatprep.subr.bf16.mxu0 0
        %822 = vmatpush1.bf16.xpose.msra.mxu0 0
        %823 = vmatprep.subr.bf16.mxu0 0
        %824 = vmatpush1.bf16.xpose.msra.mxu0 0
        %825 = vmatprep.subr.bf16.mxu0 0
        %826 = vmatpush1.bf16.xpose.msra.mxu0 0
        %827 = vmatprep.subr.bf16.mxu0 0
        %828 = vmatpush1.bf16.xpose.msra.mxu0 0
        %829 = vmatprep.subr.bf16.mxu0 0
        %830 = vmatpush1.bf16.xpose.msra.mxu0 0
        %831 = vmatprep.subr.bf16.mxu0 0
        %832 = vmatpush1.bf16.xpose.msra.mxu0 0
        %833 = vmatprep.subr.bf16.mxu0 0
        %834 = vmatpush1.bf16.xpose.msra.mxu0 0
        %835 = vmatprep.subr.bf16.mxu0 0
        %836 = vmatpush1.bf16.xpose.msra.mxu0 0
        %837 = vmatprep.subr.bf16.mxu0 0
        %838 = vmatpush1.bf16.xpose.msra.mxu0 0
        %839 = vmatprep.mubr.bf16.mxu0 0
        %840 = vmatmul.mubr.bf16.gmra.mrb[0].mxu0 %v802
        %v841 = vpop.f32.mrb[0].mxu0
        %v842 = vadd.f32 %v477, %v841
        %v843 = vpop.f32.mrb[0].mxu0
        %v844 = vpop.f32.mrb[0].mxu0
        %v845 = vpop.f32.mrb[0].mxu0
        %846 = vdwg.mxu0
        %v847 = vsel %vm482, %v842, -inf
        %848 = vmax.xlane.f32.xlu0 %v847
        %v849 = vpop.xlane.xlu0 %848
        %v850 = vsub.f32 %v842, %v849
        %v851 = vmul.f32 %v850, 1.442695
        %v852 = vpow.pop %v851
        %v853 = vsel %vm482, %v852, 0.0
        %854 = vadd.xlane.f32.xlu0 %v853
        %v855 = vpop.xlane.xlu0 %854
        %v856 = vrcp.pop %v855
        %v857 = vmul.f32 %v852, %v856
        %v858 = vpack.c.bf16 %v857, %v857
        %859 = vrot.lane.b32.xlu0 %v478, 48
        %v860 = vpop.permute.xlu0 %859
        %v862 = vsel %vm482, %v858, 0
        %v865 = vsel %vm546, %v860, 0
        %867 = vmatprep.subr.bf16.mxu0 0
        %868 = vmatpush1.bf16.msra.mxu0 %v865
        %869 = vmatprep.subr.bf16.mxu0 0
        %870 = vmatpush1.bf16.msra.mxu0 0
        %871 = vmatprep.subr.bf16.mxu0 0
        %872 = vmatpush1.bf16.msra.mxu0 0
        %873 = vmatprep.subr.bf16.mxu0 0
        %874 = vmatpush1.bf16.msra.mxu0 0
        %875 = vmatprep.subr.bf16.mxu0 0
        %876 = vmatpush1.bf16.msra.mxu0 0
        %877 = vmatprep.subr.bf16.mxu0 0
        %878 = vmatpush1.bf16.msra.mxu0 0
        %879 = vmatprep.subr.bf16.mxu0 0
        %880 = vmatpush1.bf16.msra.mxu0 0
        %881 = vmatprep.subr.bf16.mxu0 0
        %882 = vmatpush1.bf16.msra.mxu0 0
        %883 = vmatprep.subr.bf16.mxu0 0
        %884 = vmatpush1.bf16.msra.mxu0 0
        %885 = vmatprep.subr.bf16.mxu0 0
        %886 = vmatpush1.bf16.msra.mxu0 0
        %887 = vmatprep.subr.bf16.mxu0 0
        %888 = vmatpush1.bf16.msra.mxu0 0
        %889 = vmatprep.subr.bf16.mxu0 0
        %890 = vmatpush1.bf16.msra.mxu0 0
        %891 = vmatprep.subr.bf16.mxu0 0
        %892 = vmatpush1.bf16.msra.mxu0 0
        %893 = vmatprep.subr.bf16.mxu0 0
        %894 = vmatpush1.bf16.msra.mxu0 0
        %895 = vmatprep.subr.bf16.mxu0 0
        %896 = vmatpush1.bf16.msra.mxu0 0
        %897 = vmatprep.subr.bf16.mxu0 0
        %898 = vmatpush1.bf16.msra.mxu0 0
        %899 = vmatprep.mubr.bf16.mxu0 0
        %900 = vmatmul.mubr.bf16.gmra.mrb[0].mxu0 %v862
        %v901 = vpop.f32.mrb[0].mxu0
        %v902 = vadd.f32 0.0, %v901
        %v903 = vpop.f32.mrb[0].mxu0
        %v904 = vpop.f32.mrb[0].mxu0
        %v905 = vpop.f32.mrb[0].mxu0
        %906 = vdwg.mxu0
        %v907 = vpack.c.bf16 %v902, %v902
        %s908 = scalar_lea.vmem %s4, 8
        %v909 = vld [vmem:[%s908] sm:$0xf]
        %v911 = vsel %vm482, %v907, 0
        %v914 = vsel %vm546, %v909, 0
        %916 = vmatprep.subr.bf16.mxu0 0
        %917 = vmatpush1.bf16.msra.mxu0 %v914
        %918 = vmatprep.subr.bf16.mxu0 0
        %919 = vmatpush1.bf16.msra.mxu0 0
        %920 = vmatprep.subr.bf16.mxu0 0
        %921 = vmatpush1.bf16.msra.mxu0 0
        %922 = vmatprep.subr.bf16.mxu0 0
        %923 = vmatpush1.bf16.msra.mxu0 0
        %924 = vmatprep.subr.bf16.mxu0 0
        %925 = vmatpush1.bf16.msra.mxu0 0
        %926 = vmatprep.subr.bf16.mxu0 0
        %927 = vmatpush1.bf16.msra.mxu0 0
        %928 = vmatprep.subr.bf16.mxu0 0
        %929 = vmatpush1.bf16.msra.mxu0 0
        %930 = vmatprep.subr.bf16.mxu0 0
        %931 = vmatpush1.bf16.msra.mxu0 0
        %932 = vmatprep.subr.bf16.mxu0 0
        %933 = vmatpush1.bf16.msra.mxu0 0
        %934 = vmatprep.subr.bf16.mxu0 0
        %935 = vmatpush1.bf16.msra.mxu0 0
        %936 = vmatprep.subr.bf16.mxu0 0
        %937 = vmatpush1.bf16.msra.mxu0 0
        %938 = vmatprep.subr.bf16.mxu0 0
        %939 = vmatpush1.bf16.msra.mxu0 0
        %940 = vmatprep.subr.bf16.mxu0 0
        %941 = vmatpush1.bf16.msra.mxu0 0
        %942 = vmatprep.subr.bf16.mxu0 0
        %943 = vmatpush1.bf16.msra.mxu0 0
        %944 = vmatprep.subr.bf16.mxu0 0
        %945 = vmatpush1.bf16.msra.mxu0 0
        %946 = vmatprep.subr.bf16.mxu0 0
        %947 = vmatpush1.bf16.msra.mxu0 0
        %948 = vmatprep.mubr.bf16.mxu0 0
        %949 = vmatmul.mubr.bf16.gmra.mrb[0].mxu0 %v911
        %v950 = vpop.f32.mrb[0].mxu0
        %v951 = vadd.f32 0.0, %v950
        %v952 = vpop.f32.mrb[0].mxu0
        %v953 = vpop.f32.mrb[0].mxu0
        %v954 = vpop.f32.mrb[0].mxu0
        %955 = vdwg.mxu0
        %v956 = vadd.f32 %v792, %v951
        %957 = vrot.lane.b32.xlu0 %v478, 104
        %v958 = vpop.permute.xlu0 %957
        %959 = vrot.lane.b32.xlu0 %v478, 72
        %v960 = vpop.permute.xlu0 %959
        %v962 = vsel %vm482, %v958, 0
        %v965 = vsel %vm482, %v960, 0
        %967 = vmatprep.subr.bf16.mxu0 0
        %968 = vmatpush1.bf16.xpose.msra.mxu0 %v965
        %969 = vmatprep.subr.bf16.mxu0 0
        %970 = vmatpush1.bf16.xpose.msra.mxu0 0
        %971 = vmatprep.subr.bf16.mxu0 0
        %972 = vmatpush1.bf16.xpose.msra.mxu0 0
        %973 = vmatprep.subr.bf16.mxu0 0
        %974 = vmatpush1.bf16.xpose.msra.mxu0 0
        %975 = vmatprep.subr.bf16.mxu0 0
        %976 = vmatpush1.bf16.xpose.msra.mxu0 0
        %977 = vmatprep.subr.bf16.mxu0 0
        %978 = vmatpush1.bf16.xpose.msra.mxu0 0
        %979 = vmatprep.subr.bf16.mxu0 0
        %980 = vmatpush1.bf16.xpose.msra.mxu0 0
        %981 = vmatprep.subr.bf16.mxu0 0
        %982 = vmatpush1.bf16.xpose.msra.mxu0 0
        %983 = vmatprep.subr.bf16.mxu0 0
        %984 = vmatpush1.bf16.xpose.msra.mxu0 0
        %985 = vmatprep.subr.bf16.mxu0 0
        %986 = vmatpush1.bf16.xpose.msra.mxu0 0
        %987 = vmatprep.subr.bf16.mxu0 0
        %988 = vmatpush1.bf16.xpose.msra.mxu0 0
        %989 = vmatprep.subr.bf16.mxu0 0
        %990 = vmatpush1.bf16.xpose.msra.mxu0 0
        %991 = vmatprep.subr.bf16.mxu0 0
        %992 = vmatpush1.bf16.xpose.msra.mxu0 0
        %993 = vmatprep.subr.bf16.mxu0 0
        %994 = vmatpush1.bf16.xpose.msra.mxu0 0
        %995 = vmatprep.subr.bf16.mxu0 0
        %996 = vmatpush1.bf16.xpose.msra.mxu0 0
        %997 = vmatprep.subr.bf16.mxu0 0
        %998 = vmatpush1.bf16.xpose.msra.mxu0 0
        %999 = vmatprep.mubr.bf16.mxu0 0
        %1000 = vmatmul.mubr.bf16.gmra.mrb[0].mxu0 %v962
        %v1001 = vpop.f32.mrb[0].mxu0
        %v1002 = vadd.f32 %v477, %v1001
        %v1003 = vpop.f32.mrb[0].mxu0
        %v1004 = vpop.f32.mrb[0].mxu0
        %v1005 = vpop.f32.mrb[0].mxu0
        %1006 = vdwg.mxu0
        %v1007 = vsel %vm482, %v1002, -inf
        %1008 = vmax.xlane.f32.xlu0 %v1007
        %v1009 = vpop.xlane.xlu0 %1008
        %v1010 = vsub.f32 %v1002, %v1009
        %v1011 = vmul.f32 %v1010, 1.442695
        %v1012 = vpow.pop %v1011
        %v1013 = vsel %vm482, %v1012, 0.0
        %1014 = vadd.xlane.f32.xlu0 %v1013
        %v1015 = vpop.xlane.xlu0 %1014
        %v1016 = vrcp.pop %v1015
        %v1017 = vmul.f32 %v1012, %v1016
        %v1018 = vpack.c.bf16 %v1017, %v1017
        %1019 = vrot.lane.b32.xlu0 %v478, 40
        %v1020 = vpop.permute.xlu0 %1019
        %v1022 = vsel %vm482, %v1018, 0
        %v1025 = vsel %vm546, %v1020, 0
        %1027 = vmatprep.subr.bf16.mxu0 0
        %1028 = vmatpush1.bf16.msra.mxu0 %v1025
        %1029 = vmatprep.subr.bf16.mxu0 0
        %1030 = vmatpush1.bf16.msra.mxu0 0
        %1031 = vmatprep.subr.bf16.mxu0 0
        %1032 = vmatpush1.bf16.msra.mxu0 0
        %1033 = vmatprep.subr.bf16.mxu0 0
        %1034 = vmatpush1.bf16.msra.mxu0 0
        %1035 = vmatprep.subr.bf16.mxu0 0
        %1036 = vmatpush1.bf16.msra.mxu0 0
        %1037 = vmatprep.subr.bf16.mxu0 0
        %1038 = vmatpush1.bf16.msra.mxu0 0
        %1039 = vmatprep.subr.bf16.mxu0 0
        %1040 = vmatpush1.bf16.msra.mxu0 0
        %1041 = vmatprep.subr.bf16.mxu0 0
        %1042 = vmatpush1.bf16.msra.mxu0 0
        %1043 = vmatprep.subr.bf16.mxu0 0
        %1044 = vmatpush1.bf16.msra.mxu0 0
        %1045 = vmatprep.subr.bf16.mxu0 0
        %1046 = vmatpush1.bf16.msra.mxu0 0
        %1047 = vmatprep.subr.bf16.mxu0 0
        %1048 = vmatpush1.bf16.msra.mxu0 0
        %1049 = vmatprep.subr.bf16.mxu0 0
        %1050 = vmatpush1.bf16.msra.mxu0 0
        %1051 = vmatprep.subr.bf16.mxu0 0
        %1052 = vmatpush1.bf16.msra.mxu0 0
        %1053 = vmatprep.subr.bf16.mxu0 0
        %1054 = vmatpush1.bf16.msra.mxu0 0
        %1055 = vmatprep.subr.bf16.mxu0 0
        %1056 = vmatpush1.bf16.msra.mxu0 0
        %1057 = vmatprep.subr.bf16.mxu0 0
        %1058 = vmatpush1.bf16.msra.mxu0 0
        %1059 = vmatprep.mubr.bf16.mxu0 0
        %1060 = vmatmul.mubr.bf16.gmra.mrb[0].mxu0 %v1022
        %v1061 = vpop.f32.mrb[0].mxu0
        %v1062 = vadd.f32 0.0, %v1061
        %v1063 = vpop.f32.mrb[0].mxu0
        %v1064 = vpop.f32.mrb[0].mxu0
        %v1065 = vpop.f32.mrb[0].mxu0
        %1066 = vdwg.mxu0
        %v1067 = vpack.c.bf16 %v1062, %v1062
        %s1068 = scalar_lea.vmem %s4, 12
        %v1069 = vld [vmem:[%s1068] sm:$0xf]
        %v1071 = vsel %vm482, %v1067, 0
        %v1074 = vsel %vm546, %v1069, 0
        %1076 = vmatprep.subr.bf16.mxu0 0
        %1077 = vmatpush1.bf16.msra.mxu0 %v1074
        %1078 = vmatprep.subr.bf16.mxu0 0
        %1079 = vmatpush1.bf16.msra.mxu0 0
        %1080 = vmatprep.subr.bf16.mxu0 0
        %1081 = vmatpush1.bf16.msra.mxu0 0
        %1082 = vmatprep.subr.bf16.mxu0 0
        %1083 = vmatpush1.bf16.msra.mxu0 0
        %1084 = vmatprep.subr.bf16.mxu0 0
        %1085 = vmatpush1.bf16.msra.mxu0 0
        %1086 = vmatprep.subr.bf16.mxu0 0
        %1087 = vmatpush1.bf16.msra.mxu0 0
        %1088 = vmatprep.subr.bf16.mxu0 0
        %1089 = vmatpush1.bf16.msra.mxu0 0
        %1090 = vmatprep.subr.bf16.mxu0 0
        %1091 = vmatpush1.bf16.msra.mxu0 0
        %1092 = vmatprep.subr.bf16.mxu0 0
        %1093 = vmatpush1.bf16.msra.mxu0 0
        %1094 = vmatprep.subr.bf16.mxu0 0
        %1095 = vmatpush1.bf16.msra.mxu0 0
        %1096 = vmatprep.subr.bf16.mxu0 0
        %1097 = vmatpush1.bf16.msra.mxu0 0
        %1098 = vmatprep.subr.bf16.mxu0 0
        %1099 = vmatpush1.bf16.msra.mxu0 0
        %1100 = vmatprep.subr.bf16.mxu0 0
        %1101 = vmatpush1.bf16.msra.mxu0 0
        %1102 = vmatprep.subr.bf16.mxu0 0
        %1103 = vmatpush1.bf16.msra.mxu0 0
        %1104 = vmatprep.subr.bf16.mxu0 0
        %1105 = vmatpush1.bf16.msra.mxu0 0
        %1106 = vmatprep.subr.bf16.mxu0 0
        %1107 = vmatpush1.bf16.msra.mxu0 0
        %1108 = vmatprep.mubr.bf16.mxu0 0
        %1109 = vmatmul.mubr.bf16.gmra.mrb[0].mxu0 %v1071
        %v1110 = vpop.f32.mrb[0].mxu0
        %v1111 = vadd.f32 0.0, %v1110
        %v1112 = vpop.f32.mrb[0].mxu0
        %v1113 = vpop.f32.mrb[0].mxu0
        %v1114 = vpop.f32.mrb[0].mxu0
        %1115 = vdwg.mxu0
        %v1116 = vadd.f32 %v956, %v1111
        %v1117 = vld [vmem:[%s5] sm:$0x1]
        %v1119 = vlaneseq
        %v1120 = vshrl.u32 %v1119, 7
        %v1121 = vsub.s32 0, %v1120
        %v1122 = vrot.slane %v1117, %v1121
        %v1124 = vadd.f32 %v1116, %v1122
        %v1125 = vld [vmem:[%s401] sm:$0xff]
        %v1126 = vadd.f32 %v1124, %v1125
        %v1127 = vmul.f32 %v1126, %v1126
        %v1128 = vsel %vm428, %v1127, 0.0
        %1129 = vadd.xlane.f32.xlu0 %v1128
        %v1130 = vpop.xlane.xlu0 %1129
        %v1131 = vrcp.pop 32.0
        %v1132 = vmul.f32 %v1130, %v1131
        %v1133 = vadd.f32 %v1132, 1e-06
        %v1134 = vrsqrt.pop %v1133
        %v1135 = vmul.f32 %v1126, %v1134
        %v1136 = vld [vmem:[%s6] sm:$0x1]
        %v1138 = vlaneseq
        %v1139 = vshrl.u32 %v1138, 7
        %v1140 = vsub.s32 0, %v1139
        %v1141 = vrot.slane %v1136, %v1140
        %v1143 = vmul.f32 %v1135, %v1141
        %v1144 = vpack.c.bf16 %v1143, %v1143
        %v1145 = vld [vmem:[#allocation4] sm:$0xf]
        %v1146 = vld [vmem:[#allocation4 + $0x4] sm:$0xf]
        %v1147 = vld [vmem:[#allocation4 + $0x8] sm:$0xf]
        %v1148 = vld [vmem:[#allocation4 + $0xc] sm:$0xf]
        %v1149 = vld [vmem:[%s9] sm:$0x1]
        %v1151 = vlaneseq
        %v1152 = vshrl.u32 %v1151, 7
        %v1153 = vsub.s32 0, %v1152
        %v1154 = vrot.slane %v1149, %v1153
        %v1160 = vunpack.c.l.b16 %v1145
        %v1161 = vunpack.c.l.b16 %v1146
        %v1162 = vunpack.c.l.b16 %v1147
        %v1163 = vunpack.c.l.b16 %v1148
        %v1164 = vpack.c.b16 %v1161, %v1160
        %v1165 = vpack.c.b16 %v1163, %v1162
        %v1169 = vsel %vm428, %v1144, 0
        %1171 = vmatprep.subr.bf16.mxu0 0
        %1172 = vmatpush1.bf16.msra.mxu0 %v1164
        %1173 = vmatprep.subr.bf16.mxu0 0
        %1174 = vmatpush1.bf16.msra.mxu0 %v1165
        %1175 = vmatprep.subr.bf16.mxu0 0
        %1176 = vmatpush1.bf16.msra.mxu0 0
        %1177 = vmatprep.subr.bf16.mxu0 0
        %1178 = vmatpush1.bf16.msra.mxu0 0
        %1179 = vmatprep.subr.bf16.mxu0 0
        %1180 = vmatpush1.bf16.msra.mxu0 0
        %1181 = vmatprep.subr.bf16.mxu0 0
        %1182 = vmatpush1.bf16.msra.mxu0 0
        %1183 = vmatprep.subr.bf16.mxu0 0
        %1184 = vmatpush1.bf16.msra.mxu0 0
        %1185 = vmatprep.subr.bf16.mxu0 0
        %1186 = vmatpush1.bf16.msra.mxu0 0
        %1187 = vmatprep.subr.bf16.mxu0 0
        %1188 = vmatpush1.bf16.msra.mxu0 0
        %1189 = vmatprep.subr.bf16.mxu0 0
        %1190 = vmatpush1.bf16.msra.mxu0 0
        %1191 = vmatprep.subr.bf16.mxu0 0
        %1192 = vmatpush1.bf16.msra.mxu0 0
        %1193 = vmatprep.subr.bf16.mxu0 0
        %1194 = vmatpush1.bf16.msra.mxu0 0
        %1195 = vmatprep.subr.bf16.mxu0 0
        %1196 = vmatpush1.bf16.msra.mxu0 0
        %1197 = vmatprep.subr.bf16.mxu0 0
        %1198 = vmatpush1.bf16.msra.mxu0 0
        %1199 = vmatprep.subr.bf16.mxu0 0
        %1200 = vmatpush1.bf16.msra.mxu0 0
        %1201 = vmatprep.subr.bf16.mxu0 0
        %1202 = vmatpush1.bf16.msra.mxu0 0
        %1203 = vmatprep.mubr.bf16.mxu0 0
        %1204 = vmatmul.mubr.bf16.gmra.mrb[0].mxu0 %v1169
        %v1205 = vpop.f32.mrb[0].mxu0
        %v1206 = vadd.f32 %v1154, %v1205
        %v1207 = vpop.f32.mrb[0].mxu0
        %v1208 = vpop.f32.mrb[0].mxu0
        %v1209 = vpop.f32.mrb[0].mxu0
        %1210 = vdwg.mxu0
        %v1211 = vxor.u32 %v1206, 2147483648
        %v1212 = vmul.f32 %v1211, 1.442695
        %v1213 = vpow.pop %v1212
        %v1214 = vadd.f32 %v1213, 1.0
        %v1215 = vrcp.pop %v1214
        %v1216 = vmul.f32 1.0, %v1215
        %1218 = vrot.lane.b32.xlu0 %v1216, 64
        %v1219 = vpop.permute.xlu0 %1218
        %v1221 = vmul.f32 %v1206, %v1219
        %v1222 = vpack.c.bf16 %v1221, %v1221
        %v1223 = vld [vmem:[%s10] sm:$0xf]
        %v1224 = vld [vmem:[%s10 + $0x4] sm:$0xf]
        %v1225 = vld [vmem:[%s10 + $0x8] sm:$0xf]
        %v1226 = vld [vmem:[%s10 + $0xc] sm:$0xf]
        %v1227 = vld [vmem:[%s10 + $0x10] sm:$0xf]
        %v1228 = vld [vmem:[%s10 + $0x14] sm:$0xf]
        %v1229 = vld [vmem:[%s10 + $0x18] sm:$0xf]
        %v1230 = vld [vmem:[%s10 + $0x1c] sm:$0xf]
        %v1231 = vld [vmem:[%s11] sm:$0x1]
        %v1233 = vlaneseq
        %v1234 = vshrl.u32 %v1233, 7
        %v1235 = vsub.s32 0, %v1234
        %v1236 = vrot.slane %v1231, %v1235
        %v1246 = vunpack.c.l.b16 %v1223
        %v1247 = vunpack.c.l.b16 %v1224
        %v1248 = vunpack.c.l.b16 %v1225
        %v1249 = vunpack.c.l.b16 %v1226
        %v1250 = vunpack.c.l.b16 %v1227
        %v1251 = vunpack.c.l.b16 %v1228
        %v1252 = vunpack.c.l.b16 %v1229
        %v1253 = vunpack.c.l.b16 %v1230
        %v1254 = vpack.c.b16 %v1247, %v1246
        %v1255 = vpack.c.b16 %v1249, %v1248
        %v1256 = vpack.c.b16 %v1251, %v1250
        %v1257 = vpack.c.b16 %v1253, %v1252
        %vm1262 = vcmask 523264
        %v1264 = vsel %vm1262, %v1222, 0
        %1266 = vmatprep.subr.bf16.mxu0 0
        %1267 = vmatpush1.bf16.msra.mxu0 %v1254
        %1268 = vmatprep.subr.bf16.mxu0 0
        %1269 = vmatpush1.bf16.msra.mxu0 %v1255
        %1270 = vmatprep.subr.bf16.mxu0 0
        %1271 = vmatpush1.bf16.msra.mxu0 %v1256
        %1272 = vmatprep.subr.bf16.mxu0 0
        %1273 = vmatpush1.bf16.msra.mxu0 %v1257
        %1274 = vmatprep.subr.bf16.mxu0 0
        %1275 = vmatpush1.bf16.msra.mxu0 0
        %1276 = vmatprep.subr.bf16.mxu0 0
        %1277 = vmatpush1.bf16.msra.mxu0 0
        %1278 = vmatprep.subr.bf16.mxu0 0
        %1279 = vmatpush1.bf16.msra.mxu0 0
        %1280 = vmatprep.subr.bf16.mxu0 0
        %1281 = vmatpush1.bf16.msra.mxu0 0
        %1282 = vmatprep.subr.bf16.mxu0 0
        %1283 = vmatpush1.bf16.msra.mxu0 0
        %1284 = vmatprep.subr.bf16.mxu0 0
        %1285 = vmatpush1.bf16.msra.mxu0 0
        %1286 = vmatprep.subr.bf16.mxu0 0
        %1287 = vmatpush1.bf16.msra.mxu0 0
        %1288 = vmatprep.subr.bf16.mxu0 0
        %1289 = vmatpush1.bf16.msra.mxu0 0
        %1290 = vmatprep.subr.bf16.mxu0 0
        %1291 = vmatpush1.bf16.msra.mxu0 0
        %1292 = vmatprep.subr.bf16.mxu0 0
        %1293 = vmatpush1.bf16.msra.mxu0 0
        %1294 = vmatprep.subr.bf16.mxu0 0
        %1295 = vmatpush1.bf16.msra.mxu0 0
        %1296 = vmatprep.subr.bf16.mxu0 0
        %1297 = vmatpush1.bf16.msra.mxu0 0
        %1298 = vmatprep.mubr.bf16.mxu0 0
        %1299 = vmatmul.mubr.bf16.gmra.mrb[0].mxu0 %v1264
        %v1300 = vpop.f32.mrb[0].mxu0
        %v1301 = vadd.f32 %v1236, %v1300
        %v1302 = vpop.f32.mrb[0].mxu0
        %v1303 = vpop.f32.mrb[0].mxu0
        %v1304 = vpop.f32.mrb[0].mxu0
        %1305 = vdwg.mxu0
        %v1306 = vadd.f32 %v1301, %v1143
        %v1307 = vmul.f32 %v1306, %v1306
        %v1308 = vsel %vm428, %v1307, 0.0
        %1309 = vadd.xlane.f32.xlu0 %v1308
        %v1310 = vpop.xlane.xlu0 %1309
        %v1311 = vmul.f32 %v1310, %v1131
        %v1312 = vadd.f32 %v1311, 1e-06
        %v1313 = vrsqrt.pop %v1312
        %v1314 = vmul.f32 %v1306, %v1313
        %v1315 = vld [vmem:[%s7] sm:$0x1]
        %v1317 = vlaneseq
        %v1318 = vshrl.u32 %v1317, 7
        %v1319 = vsub.s32 0, %v1318
        %v1320 = vrot.slane %v1315, %v1319
        %v1322 = vmul.f32 %v1314, %v1320
        %1323 = vst.msk [vmem:[%s397] sm:$0xff] %vm428, %v1322
        %s1324 = sand.u32 %s275, 1
        %s1325 = scalar_lea.sflag [#allocation6], %s1324
        %s1326 = sand.u32 %s275, 1
        %s1327 = smul.addr %s1326, 8
        %s1328 = scalar_lea.vmem [#allocation7], %s1327
        // Predicated region
        $region69: #{tpu_custom_call.1} parent=63 // pred_check
          %p1329 = pneg %p285
        $region70: #{tpu_custom_call.1} parent=63 // pred_check_branch
          %1331 = sbr.rel (%p1329) target = $region72
        $region71: #{tpu_custom_call.1} parent=63 // pred_region
          %s1333 = ssub.s32 128, 128
          %1334 = vsyncadd %s1325, %s1333
          %s1335 = smul.addr %s31, 128
          %s1336 = scalar_lea.hbm %s12, %s1335
          %s1338 = sshll.u32 %s1328, 4
          %s1339 = int_to_ptr.vmem [resolvable:$true] %s1338
          %1341 = dma.vmem_to_hbm [thread:$0]  %s1339, 128, %s1336, %s1325
        $region72: #{tpu_custom_call.1} parent=63 // pred_fallthru
          _
      $region64: #{tpu_custom_call.1} parent=5 // pred_fallthru
        _
      %p1342 = scmp.le.s32.totalorder 2, %s26
      // Predicated region
      $region73: #{tpu_custom_call.1} parent=5 // pred_check
        %p1343 = pneg %p1342
      $region74: #{tpu_custom_call.1} parent=5 // pred_check_branch
        %1345 = sbr.rel (%p1343) target = $region76
      $region75: #{tpu_custom_call.1} parent=5 // pred_region
        %s1346 = ssub.s32 %s26, 2
        // Predicated region
        $region77: #{tpu_custom_call.1} parent=75 // pred_check
          %p1347 = pneg %p291
        $region78: #{tpu_custom_call.1} parent=75 // pred_check_branch
          %1349 = sbr.rel (%p1347) target = $region80
        $region79: #{tpu_custom_call.1} parent=75 // pred_region
          %s1350 = sand.u32 %s276, 1
          %s1351 = scalar_lea.sflag [#allocation6], %s1350
          %s1352 = sand.u32 %s276, 1
          %s1353 = smul.addr %s1352, 8
          %s1354 = scalar_lea.vmem [#allocation7], %s1353
          %1355 = dma.done %s1351, 128
        $region80: #{tpu_custom_call.1} parent=75 // pred_fallthru
          _
      $region76: #{tpu_custom_call.1} parent=5 // pred_fallthru
        _
    $region6: #{tpu_custom_call.1} parent=1 // loop_footer
      %s30 = sadd.s32 1, %s26
    $region7: #{tpu_custom_call.1} parent=1 // loop_footer_branch
      %25 = sbr.rel target = $region3
    $region8: #{tpu_custom_call.1} parent=1 // loop_exit
      _
    %1356 = vsyncpa [#allocation5], 1
    %s1357 = scalar_lea.sflag [#allocation5], 1
    %1358 = vsyncpa %s1357, 1
    %1359 = vsyncpa [#allocation6], 1
    %s1360 = scalar_lea.sflag [#allocation6], 1
    %1361 = vsyncpa %s1360, 1

</llo_original>
